<compile_context>
chip_gen: v7x
topology: tpu7x:2x2x1
jax: 0.10.0
libtpu: 0.0.40
codegen_flags: <defaults>
</compile_context>

<pallas_src>
import jax
import jax.numpy as jnp
from jax.experimental import pallas as pl
from jax.experimental.pallas import tpu as pltpu

# ----------------------- config (small synthetic shapes) -----------------------
N_CLASSES = 10
CHANNELS = 1
IMG_SIZE = 8
HIDDEN = 512

IMG_FLAT = CHANNELS * IMG_SIZE * IMG_SIZE          # prod(img_shape) = 64
D_IN = N_CLASSES + IMG_FLAT                        # logical MLP input dim = 74

B_MIN = 8                                          # f32 sublane tile
N_CLASSES_PAD = 16                                 # sublane-aligned emb_w1 rows
OUT_PAD = 128                                      # lane-dense output width


# ------------------------------- Pallas kernel --------------------------------
def _leaky_relu(x, slope=0.2):
    # Single vmax instead of compare+select.
    return jnp.maximum(x, slope * x)


def _make_kernel(b_pad):
    def discriminator_mlp_kernel(labels_ref, img_ref, embw1_ref,
                                 w1_ref, b1_ref, w2_ref, b2_ref,
                                 w3_ref, b3_ref, w4_ref, b4_ref,
                                 o_ref, emb_scr):
        # In-kernel embedding gather: emb_scr[i] = (emb_table @ W1_tail)[labels[i]].
        # Labels come from SMEM; each row is a dynamic sublane slice of the
        # small VMEM table.
        for i in range(b_pad):
            lbl = labels_ref[i]
            emb_scr[pl.ds(i, 1), :] = embw1_ref[pl.ds(lbl, 1), :]

        # Layer 1: img_flat @ W1_head (bf16 MXU, f32 acc) + fused-emb rows + b1.
        x = img_ref[...].astype(jnp.bfloat16)                          # (b_pad, 64)
        h = jnp.dot(x, w1_ref[...], preferred_element_type=jnp.float32)
        h = _leaky_relu(h + emb_scr[...] + b1_ref[...])

        # Layer 2 (Dropout(0.4) -> identity in eval mode).
        h = _leaky_relu(
            jnp.dot(h.astype(jnp.bfloat16), w2_ref[...],
                    preferred_element_type=jnp.float32) + b2_ref[...])

        # Layer 3 (Dropout(0.4) -> identity in eval mode).
        h = _leaky_relu(
            jnp.dot(h.astype(jnp.bfloat16), w3_ref[...],
                    preferred_element_type=jnp.float32) + b3_ref[...])

        # Layer 4 (512 -> 1): VPU multiply + lane reduction against a (1,512)
        # f32 row; broadcast across 128 lanes so the store stays an unmasked
        # full-lane vst.  Only lane 0 is meaningful.
        logit = jnp.sum(h * w4_ref[...], axis=-1, keepdims=True) + b4_ref[...]
        o_ref[...] = jnp.broadcast_to(logit, (b_pad, OUT_PAD))

    return discriminator_mlp_kernel


def discriminator_forward(img, labels, params):
    """img: (B, C, H, W) f32, labels: (B,) int -> validity (B, 1) f32.

    Batch real + fake (and any micro-batches) into one call: the kernel is
    weight-DMA bound, so one weight fetch should serve as many rows as possible.
    """
    p = params["kernel"]
    B = img.shape[0]
    b_pad = max(B_MIN, ((B + B_MIN - 1) // B_MIN) * B_MIN)

    img_flat = img.reshape(B, -1)                          # (B, 64) f32 (NCHW flatten)
    labels = labels.astype(jnp.int32)
    if b_pad != B:                                         # only when misaligned
        img_flat = jnp.pad(img_flat, ((0, b_pad - B), (0, 0)))
        labels = jnp.pad(labels, (0, b_pad - B))

    vmem = pl.BlockSpec(memory_space=pltpu.MemorySpace.VMEM)
    smem = pl.BlockSpec(memory_space=pltpu.MemorySpace.SMEM)

    operands = (labels, img_flat,
                p["emb_w1"],
                p["w1_head"], p["b1"],
                p["w2"], p["b2"],
                p["w3"], p["b3"],
                p["w4_row"], p["b4"])

    flops = 2 * b_pad * (IMG_FLAT * HIDDEN + 2 * HIDDEN * HIDDEN + HIDDEN)
    bytes_accessed = (sum(int(x.size) * x.dtype.itemsize for x in operands)
                      + b_pad * OUT_PAD * 4)

    out = pl.pallas_call(
        _make_kernel(b_pad),
        out_shape=jax.ShapeDtypeStruct((b_pad, OUT_PAD), jnp.float32),
        in_specs=[smem] + [vmem] * (len(operands) - 1),
        out_specs=vmem,
        scratch_shapes=[pltpu.VMEM((b_pad, HIDDEN), jnp.float32)],
        cost_estimate=pl.CostEstimate(flops=flops, transcendentals=0,
                                      bytes_accessed=bytes_accessed),
    )(*operands)
    return out[:B, :1]                                     # (B, 1)


# ----------------------------- parameter init ---------------------------------
def init_params(key):
    ks = jax.random.split(key, 9)

    def linear(kw, kb, fan_in, fan_out):
        bound = fan_in ** -0.5
        w = jax.random.uniform(kw, (fan_in, fan_out), jnp.float32, -bound, bound)
        b = jax.random.uniform(kb, (1, fan_out), jnp.float32, -bound, bound)
        return w, b

    emb = jax.random.normal(ks[0], (N_CLASSES, N_CLASSES), jnp.float32)
    w1, b1 = linear(ks[1], ks[2], D_IN, HIDDEN)            # (74, 512)
    w2, b2 = linear(ks[3], ks[4], HIDDEN, HIDDEN)
    w3, b3 = linear(ks[5], ks[6], HIDDEN, HIDDEN)
    w4, b4 = linear(ks[7], ks[8], HIDDEN, 1)               # (512, 1), (1, 1)

    # Algebraic fusion of the embedding into layer 1 (f32, exact):
    #   concat(img, emb[l]) @ W1 == img @ W1[:64] + (emb @ W1[64:])[l]
    emb_w1 = emb @ w1[IMG_FLAT:]                           # (10, 512) f32
    emb_w1 = jnp.pad(emb_w1, ((0, N_CLASSES_PAD - N_CLASSES), (0, 0)))  # (16, 512)

    kernel = dict(
        emb_w1=emb_w1,                                     # f32 (16, 512)
        w1_head=w1[:IMG_FLAT].astype(jnp.bfloat16),        # bf16 (64, 512)
        b1=b1,                                             # f32 (1, 512)
        w2=w2.astype(jnp.bfloat16), b2=b2,
        w3=w3.astype(jnp.bfloat16), b3=b3,
        w4_row=jnp.transpose(w4),                          # f32 (1, 512)
        b4=b4,                                             # f32 (1, 1)
    )
    # Full-precision originals for the reference check (true PyTorch math).
    ref = dict(emb=emb, w1=w1, b1=b1, w2=w2, b2=b2, w3=w3, b3=b3, w4=w4, b4=b4)
    return dict(kernel=kernel, ref=ref)


# --------------------- pure-JAX f32 reference (PyTorch math) -------------------
def discriminator_reference(img, labels, params):
    r = params["ref"]
    B = img.shape[0]
    d_in = jnp.concatenate([img.reshape(B, -1), r["emb"][labels]], axis=-1)

    def leaky(x):
        return jnp.where(x >= 0, x, 0.2 * x)

    h = leaky(d_in @ r["w1"] + r["b1"])
    h = leaky(h @ r["w2"] + r["b2"])      # Dropout(0.4) = identity in eval
    h = leaky(h @ r["w3"] + r["b3"])      # Dropout(0.4) = identity in eval
    return h @ r["w4"] + r["b4"]          # (B, 1)


# ----------------------------------- main --------------------------------------
if __name__ == "__main__":
    key = jax.random.PRNGKey(0)
    k_real, k_fake, k_lab, k_par = jax.random.split(key, 4)

    # Stack "real" and "fake" halves of a GAN discriminator step into one B=8
    # call so a single weight DMA serves both.
    real = jax.random.normal(k_real, (4, CHANNELS, IMG_SIZE, IMG_SIZE), jnp.float32)
    fake = jax.random.normal(k_fake, (4, CHANNELS, IMG_SIZE, IMG_SIZE), jnp.float32)
    img = jnp.concatenate([real, fake], axis=0)            # (8, 1, 8, 8)
    labels = jax.random.randint(k_lab, (8,), 0, N_CLASSES, jnp.int32)
    params = init_params(k_par)

    validity = discriminator_forward(img, labels, params)
    jax.block_until_ready(validity)

    assert validity.shape == (8, 1)
    assert validity.dtype == jnp.float32
    assert bool(jnp.all(jnp.isfinite(validity)))

    # Cross-check against the exact f32 eval-mode math (kernel uses bf16
    # matmul operands with f32 accumulation -> ~1e-2-level deviation expected).
    ref = discriminator_reference(img, labels, params)
    assert jnp.allclose(validity, ref, rtol=5e-2, atol=5e-2), (validity, ref)

    print("KERNEL_OK")
</pallas_src>

<mosaic_0001>
module attributes {stable_mosaic.version = 11 : i64} {
  func.func @discriminator_mlp_kernel(%arg0: memref<8xi32, #tpu.memory_space<smem>>, %arg1: memref<8x64xf32, #tpu.memory_space<vmem>>, %arg2: memref<16x512xf32, #tpu.memory_space<vmem>>, %arg3: memref<64x512xbf16, #tpu.memory_space<vmem>>, %arg4: memref<1x512xf32, #tpu.memory_space<vmem>>, %arg5: memref<512x512xbf16, #tpu.memory_space<vmem>>, %arg6: memref<1x512xf32, #tpu.memory_space<vmem>>, %arg7: memref<512x512xbf16, #tpu.memory_space<vmem>>, %arg8: memref<1x512xf32, #tpu.memory_space<vmem>>, %arg9: memref<1x512xf32, #tpu.memory_space<vmem>>, %arg10: memref<1x1xf32, #tpu.memory_space<vmem>>, %arg11: memref<8x128xf32, #tpu.memory_space<vmem>>, %arg12: memref<8x512xf32, #tpu.memory_space<vmem>>) attributes {dimension_semantics = [], scalar_prefetch = 0 : i64, scratch_operands = 1 : i64, tpu.core_type = #tpu.core_type<tc>} {
    %c0 = arith.constant 0 : index
    %0 = memref.load %arg0[%c0] : memref<8xi32, #tpu.memory_space<smem>>
    %1 = arith.index_cast %0 : i32 to index
    %c0_0 = arith.constant 0 : index
    %2 = vector.load %arg2[%1, %c0_0] : memref<16x512xf32, #tpu.memory_space<vmem>>, vector<1x512xf32>
    %c0_1 = arith.constant 0 : index
    %c0_2 = arith.constant 0 : index
    %3 = vector.load %arg12[%c0_1, %c0_2] : memref<8x512xf32, #tpu.memory_space<vmem>>, vector<1x512xf32>
    tpu.vector_store %arg12[%c0_1, %c0_2], %2 {strides = array<i32>} : memref<8x512xf32, #tpu.memory_space<vmem>>, vector<1x512xf32>,
    %c1 = arith.constant 1 : index
    %4 = memref.load %arg0[%c1] : memref<8xi32, #tpu.memory_space<smem>>
    %5 = arith.index_cast %4 : i32 to index
    %c0_3 = arith.constant 0 : index
    %6 = vector.load %arg2[%5, %c0_3] : memref<16x512xf32, #tpu.memory_space<vmem>>, vector<1x512xf32>
    %c1_4 = arith.constant 1 : index
    %c0_5 = arith.constant 0 : index
    %7 = vector.load %arg12[%c1_4, %c0_5] : memref<8x512xf32, #tpu.memory_space<vmem>>, vector<1x512xf32>
    tpu.vector_store %arg12[%c1_4, %c0_5], %6 {strides = array<i32>} : memref<8x512xf32, #tpu.memory_space<vmem>>, vector<1x512xf32>,
    %c2 = arith.constant 2 : index
    %8 = memref.load %arg0[%c2] : memref<8xi32, #tpu.memory_space<smem>>
    %9 = arith.index_cast %8 : i32 to index
    %c0_6 = arith.constant 0 : index
    %10 = vector.load %arg2[%9, %c0_6] : memref<16x512xf32, #tpu.memory_space<vmem>>, vector<1x512xf32>
    %c2_7 = arith.constant 2 : index
    %c0_8 = arith.constant 0 : index
    %11 = vector.load %arg12[%c2_7, %c0_8] : memref<8x512xf32, #tpu.memory_space<vmem>>, vector<1x512xf32>
    tpu.vector_store %arg12[%c2_7, %c0_8], %10 {strides = array<i32>} : memref<8x512xf32, #tpu.memory_space<vmem>>, vector<1x512xf32>,
    %c3 = arith.constant 3 : index
    %12 = memref.load %arg0[%c3] : memref<8xi32, #tpu.memory_space<smem>>
    %13 = arith.index_cast %12 : i32 to index
    %c0_9 = arith.constant 0 : index
    %14 = vector.load %arg2[%13, %c0_9] : memref<16x512xf32, #tpu.memory_space<vmem>>, vector<1x512xf32>
    %c3_10 = arith.constant 3 : index
    %c0_11 = arith.constant 0 : index
    %15 = vector.load %arg12[%c3_10, %c0_11] : memref<8x512xf32, #tpu.memory_space<vmem>>, vector<1x512xf32>
    tpu.vector_store %arg12[%c3_10, %c0_11], %14 {strides = array<i32>} : memref<8x512xf32, #tpu.memory_space<vmem>>, vector<1x512xf32>,
    %c4 = arith.constant 4 : index
    %16 = memref.load %arg0[%c4] : memref<8xi32, #tpu.memory_space<smem>>
    %17 = arith.index_cast %16 : i32 to index
    %c0_12 = arith.constant 0 : index
    %18 = vector.load %arg2[%17, %c0_12] : memref<16x512xf32, #tpu.memory_space<vmem>>, vector<1x512xf32>
    %c4_13 = arith.constant 4 : index
    %c0_14 = arith.constant 0 : index
    %19 = vector.load %arg12[%c4_13, %c0_14] : memref<8x512xf32, #tpu.memory_space<vmem>>, vector<1x512xf32>
    tpu.vector_store %arg12[%c4_13, %c0_14], %18 {strides = array<i32>} : memref<8x512xf32, #tpu.memory_space<vmem>>, vector<1x512xf32>,
    %c5 = arith.constant 5 : index
    %20 = memref.load %arg0[%c5] : memref<8xi32, #tpu.memory_space<smem>>
    %21 = arith.index_cast %20 : i32 to index
    %c0_15 = arith.constant 0 : index
    %22 = vector.load %arg2[%21, %c0_15] : memref<16x512xf32, #tpu.memory_space<vmem>>, vector<1x512xf32>
    %c5_16 = arith.constant 5 : index
    %c0_17 = arith.constant 0 : index
    %23 = vector.load %arg12[%c5_16, %c0_17] : memref<8x512xf32, #tpu.memory_space<vmem>>, vector<1x512xf32>
    tpu.vector_store %arg12[%c5_16, %c0_17], %22 {strides = array<i32>} : memref<8x512xf32, #tpu.memory_space<vmem>>, vector<1x512xf32>,
    %c6 = arith.constant 6 : index
    %24 = memref.load %arg0[%c6] : memref<8xi32, #tpu.memory_space<smem>>
    %25 = arith.index_cast %24 : i32 to index
    %c0_18 = arith.constant 0 : index
    %26 = vector.load %arg2[%25, %c0_18] : memref<16x512xf32, #tpu.memory_space<vmem>>, vector<1x512xf32>
    %c6_19 = arith.constant 6 : index
    %c0_20 = arith.constant 0 : index
    %27 = vector.load %arg12[%c6_19, %c0_20] : memref<8x512xf32, #tpu.memory_space<vmem>>, vector<1x512xf32>
    tpu.vector_store %arg12[%c6_19, %c0_20], %26 {strides = array<i32>} : memref<8x512xf32, #tpu.memory_space<vmem>>, vector<1x512xf32>,
    %c7 = arith.constant 7 : index
    %28 = memref.load %arg0[%c7] : memref<8xi32, #tpu.memory_space<smem>>
    %29 = arith.index_cast %28 : i32 to index
    %c0_21 = arith.constant 0 : index
    %30 = vector.load %arg2[%29, %c0_21] : memref<16x512xf32, #tpu.memory_space<vmem>>, vector<1x512xf32>
    %c7_22 = arith.constant 7 : index
    %c0_23 = arith.constant 0 : index
    %31 = vector.load %arg12[%c7_22, %c0_23] : memref<8x512xf32, #tpu.memory_space<vmem>>, vector<1x512xf32>
    tpu.vector_store %arg12[%c7_22, %c0_23], %30 {strides = array<i32>} : memref<8x512xf32, #tpu.memory_space<vmem>>, vector<1x512xf32>,
    %c0_24 = arith.constant 0 : index
    %c0_25 = arith.constant 0 : index
    %32 = vector.load %arg1[%c0_24, %c0_25] : memref<8x64xf32, #tpu.memory_space<vmem>>, vector<8x64xf32>
    %33 = arith.truncf %32 : vector<8x64xf32> to vector<8x64xbf16>
    %c0_26 = arith.constant 0 : index
    %c0_27 = arith.constant 0 : index
    %34 = vector.load %arg3[%c0_26, %c0_27] : memref<64x512xbf16, #tpu.memory_space<vmem>>, vector<64x512xbf16>
    %cst = arith.constant dense<0.000000e+00> : vector<8x512xf32>
    %35 = tpu.matmul %33, %34, %cst {dimension_numbers = #tpu.dot_dimension_numbers<[1], [0], [0], [1], [0, 0, 1, 1], [], []>} : vector<8x64xbf16>, vector<64x512xbf16>, vector<8x512xf32> -> vector<8x512xf32>
    %c0_28 = arith.constant 0 : index
    %c0_29 = arith.constant 0 : index
    %36 = vector.load %arg12[%c0_28, %c0_29] : memref<8x512xf32, #tpu.memory_space<vmem>>, vector<8x512xf32>
    %37 = arith.addf %35, %36 : vector<8x512xf32>
    %c0_30 = arith.constant 0 : index
    %c0_31 = arith.constant 0 : index
    %38 = vector.load %arg4[%c0_30, %c0_31] : memref<1x512xf32, #tpu.memory_space<vmem>>, vector<1x512xf32>
    %39 = vector.broadcast %38 : vector<1x512xf32> to vector<8x512xf32>
    %40 = arith.addf %37, %39 : vector<8x512xf32>
    %cst_32 = arith.constant 2.000000e-01 : f32
    %41 = vector.broadcast %cst_32 : f32 to vector<8x512xf32>
    %42 = arith.mulf %41, %40 : vector<8x512xf32>
    %43 = arith.maximumf %40, %42 : vector<8x512xf32>
    %44 = arith.truncf %43 : vector<8x512xf32> to vector<8x512xbf16>
    %c0_33 = arith.constant 0 : index
    %c0_34 = arith.constant 0 : index
    %45 = vector.load %arg5[%c0_33, %c0_34] : memref<512x512xbf16, #tpu.memory_space<vmem>>, vector<512x512xbf16>
    %cst_35 = arith.constant dense<0.000000e+00> : vector<8x512xf32>
    %46 = tpu.matmul %44, %45, %cst_35 {dimension_numbers = #tpu.dot_dimension_numbers<[1], [0], [0], [1], [0, 0, 1, 1], [], []>} : vector<8x512xbf16>, vector<512x512xbf16>, vector<8x512xf32> -> vector<8x512xf32>
    %c0_36 = arith.constant 0 : index
    %c0_37 = arith.constant 0 : index
    %47 = vector.load %arg6[%c0_36, %c0_37] : memref<1x512xf32, #tpu.memory_space<vmem>>, vector<1x512xf32>
    %48 = vector.broadcast %47 : vector<1x512xf32> to vector<8x512xf32>
    %49 = arith.addf %46, %48 : vector<8x512xf32>
    %cst_38 = arith.constant 2.000000e-01 : f32
    %50 = vector.broadcast %cst_38 : f32 to vector<8x512xf32>
    %51 = arith.mulf %50, %49 : vector<8x512xf32>
    %52 = arith.maximumf %49, %51 : vector<8x512xf32>
    %53 = arith.truncf %52 : vector<8x512xf32> to vector<8x512xbf16>
    %c0_39 = arith.constant 0 : index
    %c0_40 = arith.constant 0 : index
    %54 = vector.load %arg7[%c0_39, %c0_40] : memref<512x512xbf16, #tpu.memory_space<vmem>>, vector<512x512xbf16>
    %cst_41 = arith.constant dense<0.000000e+00> : vector<8x512xf32>
    %55 = tpu.matmul %53, %54, %cst_41 {dimension_numbers = #tpu.dot_dimension_numbers<[1], [0], [0], [1], [0, 0, 1, 1], [], []>} : vector<8x512xbf16>, vector<512x512xbf16>, vector<8x512xf32> -> vector<8x512xf32>
    %c0_42 = arith.constant 0 : index
    %c0_43 = arith.constant 0 : index
    %56 = vector.load %arg8[%c0_42, %c0_43] : memref<1x512xf32, #tpu.memory_space<vmem>>, vector<1x512xf32>
    %57 = vector.broadcast %56 : vector<1x512xf32> to vector<8x512xf32>
    %58 = arith.addf %55, %57 : vector<8x512xf32>
    %cst_44 = arith.constant 2.000000e-01 : f32
    %59 = vector.broadcast %cst_44 : f32 to vector<8x512xf32>
    %60 = arith.mulf %59, %58 : vector<8x512xf32>
    %61 = arith.maximumf %58, %60 : vector<8x512xf32>
    %c0_45 = arith.constant 0 : index
    %c0_46 = arith.constant 0 : index
    %62 = vector.load %arg9[%c0_45, %c0_46] : memref<1x512xf32, #tpu.memory_space<vmem>>, vector<1x512xf32>
    %63 = vector.broadcast %62 : vector<1x512xf32> to vector<8x512xf32>
    %64 = arith.mulf %61, %63 : vector<8x512xf32>
    %cst_47 = arith.constant dense<0.000000e+00> : vector<8xf32>
    %65 = vector.multi_reduction <add>, %64, %cst_47 [1] : vector<8x512xf32> to vector<8xf32>
    %66 = vector.shape_cast %65 : vector<8xf32> to vector<8x1xf32>
    %c0_48 = arith.constant 0 : index
    %c0_49 = arith.constant 0 : index
    %67 = vector.load %arg10[%c0_48, %c0_49] : memref<1x1xf32, #tpu.memory_space<vmem>>, vector<1x1xf32>
    %68 = vector.broadcast %67 : vector<1x1xf32> to vector<8x1xf32>
    %69 = arith.addf %66, %68 : vector<8x1xf32>
    %70 = vector.shape_cast %69 : vector<8x1xf32> to vector<8x1xf32>
    %71 = vector.broadcast %70 : vector<8x1xf32> to vector<8x128xf32>
    %c0_50 = arith.constant 0 : index
    %c0_51 = arith.constant 0 : index
    %72 = vector.load %arg11[%c0_50, %c0_51] : memref<8x128xf32, #tpu.memory_space<vmem>>, vector<8x128xf32>
    tpu.vector_store %arg11[%c0_50, %c0_51], %71 {strides = array<i32>} : memref<8x128xf32, #tpu.memory_space<vmem>>, vector<8x128xf32>,
    return
  }
}

</mosaic_0001>

<llo_original>
// kernel: tpu_custom_call.1
$region0: #{tpu_custom_call.1}
  #allocation0 [shape = 'u32[]', space=smem, size = 0x4, offset = 0x4, fixed_abs, tag = 'smem constant byte address 0x4 - core index']
  #allocation1 [shape = 'u32[144,128]{1,0:T(1,128)}', space=vmem, size = 0x12000, scoped, tag = 'internal scratch']
  #allocation2 [shape = 'f32[8,512]{1,0:T(8,128)}', space=vmem, size = 0x4000, scoped, tag = 'scratch operand']
  #allocation3 [shape = 'f32[1,1]{1,0:T(1,128)S(1)}', space=vmem, size = 0x200, scoped, tag = 'scoped memory for tpu_custom_call.1']
  %s0 = inlined_call_operand.vmem [shape: s32[8], index: 0, kind: input, shape index: {}]
  %s1 = inlined_call_operand.hbm [shape: f32[8,64], index: 1, kind: input, shape index: {}]
  %s2 = inlined_call_operand.hbm [shape: f32[16,512], index: 2, kind: input, shape index: {}]
  %s3 = inlined_call_operand.hbm [shape: bf16[64,512], index: 3, kind: input, shape index: {}]
  %s4 = inlined_call_operand.vmem [shape: f32[1,512], index: 4, kind: input, shape index: {}]
  %s5 = inlined_call_operand.hbm [shape: bf16[512,512], index: 5, kind: input, shape index: {}]
  %s6 = inlined_call_operand.vmem [shape: f32[1,512], index: 6, kind: input, shape index: {}]
  %s7 = inlined_call_operand.hbm [shape: bf16[512,512], index: 7, kind: input, shape index: {}]
  %s8 = inlined_call_operand.vmem [shape: f32[1,512], index: 8, kind: input, shape index: {}]
  %s9 = inlined_call_operand.vmem [shape: f32[1,512], index: 9, kind: input, shape index: {}]
  %s10 = inlined_call_operand.<no memory space> [shape: f32[1,1], index: 10, kind: input, shape index: {}]
  %s11 = inlined_call_operand.hbm [shape: f32[8,128], index: 11, kind: output, shape index: {}]
  %s12 = sld [smem:[#allocation0]]
  $region78: #{tpu_custom_call.1} parent=0
    _
  %s14 = ssub.s32 1, %s12
  %s15 = scalar_select 0, %s14, %s12
  %v16 = vstv %s10
  %17 = vst [vmem:[#allocation3] sm:$0x1] %v16
  $region1: #{tpu_custom_call.1} parent=0
    #allocation4 [shape = 'u8[512]{0}', space=smem, size = 0x200, scoped, tag = 'input window, operand 0, single buffered']
    #allocation5 [shape = 's32[1]{0}', space=sflag, size = 0x4, scoped, tag = 'scoped memory for tpu_custom_call.1']
    #allocation6 [shape = 's32[1]{0}', space=sflag, size = 0x4, scoped, tag = 'scoped memory for tpu_custom_call.1']
    #allocation7 [shape = 's32[1]{0}', space=sflag, size = 0x4, scoped, tag = 'scoped memory for tpu_custom_call.1']
    #allocation8 [shape = 'u8[4096]{0}', space=vmem, size = 0x1000, scoped, tag = 'input window, operand 1, single buffered']
    #allocation9 [shape = 'u8[32768]{0}', space=vmem, size = 0x8000, scoped, tag = 'input window, operand 2, single buffered']
    #allocation10 [shape = 's32[1]{0}', space=sflag, size = 0x4, scoped, tag = 'scoped memory for tpu_custom_call.1']
    #allocation11 [shape = 'u8[65536]{0}', space=vmem, size = 0x10000, scoped, tag = 'input window, operand 3, single buffered']
    #allocation12 [shape = 'u8[524288]{0}', space=vmem, size = 0x80000, scoped, tag = 'input window, operand 5, single buffered']
    #allocation13 [shape = 's32[1]{0}', space=sflag, size = 0x4, scoped, tag = 'scoped memory for tpu_custom_call.1']
    #allocation14 [shape = 'u8[524288]{0}', space=vmem, size = 0x80000, scoped, tag = 'input window, operand 7, single buffered']
    #allocation15 [shape = 'u8[4096]{0}', space=vmem, size = 0x1000, scoped, tag = 'output window, operand 0, single buffered']
    %18 = vsyncpa [#allocation7], 0
    %19 = vsyncpa [#allocation5], 0
    %20 = vsyncpa [#allocation10], 0
    %21 = vsyncpa [#allocation13], 0
    %22 = vsyncpa [#allocation6], 0
    // Predicated region
    $region2: #{tpu_custom_call.1} parent=1 // pred_check
      _
    $region3: #{tpu_custom_call.1} parent=1 // pred_check_branch
      %24 = sbr.rel (0) target = $region5
    $region4: #{tpu_custom_call.1} parent=1 // pred_region
      %s26 = ssub.s32 16, 16
      %27 = vsyncadd [#allocation7], %s26
      %s29 = sshll.u32 %s0, 4
      %s30 = int_to_ptr.vmem [resolvable:$true] %s29
      %32 = dma.vmem_to_smem %s30, 16, [#allocation4], [#allocation7]
    $region5: #{tpu_custom_call.1} parent=1 // pred_fallthru
      _
    // Predicated region
    $region6: #{tpu_custom_call.1} parent=1 // pred_check
      _
    $region7: #{tpu_custom_call.1} parent=1 // pred_check_branch
      %34 = sbr.rel (0) target = $region9
    $region8: #{tpu_custom_call.1} parent=1 // pred_region
      %s36 = ssub.s32 128, 128
      %37 = vsyncadd [#allocation5], %s36
      %s39 = sshll.u32 [#allocation8], 4
      %s40 = int_to_ptr.vmem [resolvable:$true] %s39
      %42 = dma.hbm_to_vmem [thread:$0]  %s1, 128, %s40, [#allocation5]
    $region9: #{tpu_custom_call.1} parent=1 // pred_fallthru
      _
    // Predicated region
    $region10: #{tpu_custom_call.1} parent=1 // pred_check
      _
    $region11: #{tpu_custom_call.1} parent=1 // pred_check_branch
      %44 = sbr.rel (0) target = $region13
    $region12: #{tpu_custom_call.1} parent=1 // pred_region
      %s46 = ssub.s32 1024, 1024
      %47 = vsyncadd [#allocation10], %s46
      %s48 = sshll.u32 [#allocation9], 4
      %s49 = int_to_ptr.vmem [resolvable:$true] %s48
      %54 = dma.hbm_to_vmem [thread:$0]  %s2, 1024, %s49, [#allocation10], 512, 512, 32
    $region13: #{tpu_custom_call.1} parent=1 // pred_fallthru
      _
    // Predicated region
    $region14: #{tpu_custom_call.1} parent=1 // pred_check
      _
    $region15: #{tpu_custom_call.1} parent=1 // pred_check_branch
      %56 = sbr.rel (0) target = $region17
    $region16: #{tpu_custom_call.1} parent=1 // pred_region
      %s58 = ssub.s32 2048, 2048
      %59 = vsyncadd [#allocation10], %s58
      %s60 = sshll.u32 [#allocation11], 4
      %s61 = int_to_ptr.vmem [resolvable:$true] %s60
      %66 = dma.hbm_to_vmem [thread:$0]  %s3, 2048, %s61, [#allocation10], 256, 256, 16
    $region17: #{tpu_custom_call.1} parent=1 // pred_fallthru
      _
    // Predicated region
    $region18: #{tpu_custom_call.1} parent=1 // pred_check
      _
    $region19: #{tpu_custom_call.1} parent=1 // pred_check_branch
      %68 = sbr.rel (0) target = $region21
    $region20: #{tpu_custom_call.1} parent=1 // pred_region
      _
    $region21: #{tpu_custom_call.1} parent=1 // pred_fallthru
      _
    // Predicated region
    $region22: #{tpu_custom_call.1} parent=1 // pred_check
      _
    $region23: #{tpu_custom_call.1} parent=1 // pred_check_branch
      %70 = sbr.rel (0) target = $region25
    $region24: #{tpu_custom_call.1} parent=1 // pred_region
      %s72 = ssub.s32 16384, 16384
      %73 = vsyncadd [#allocation13], %s72
      %s74 = sshll.u32 [#allocation12], 4
      %s75 = int_to_ptr.vmem [resolvable:$true] %s74
      %80 = dma.hbm_to_vmem [thread:$0]  %s5, 16384, %s75, [#allocation13], 256, 256, 16
    $region25: #{tpu_custom_call.1} parent=1 // pred_fallthru
      _
    // Predicated region
    $region26: #{tpu_custom_call.1} parent=1 // pred_check
      _
    $region27: #{tpu_custom_call.1} parent=1 // pred_check_branch
      %82 = sbr.rel (0) target = $region29
    $region28: #{tpu_custom_call.1} parent=1 // pred_region
      _
    $region29: #{tpu_custom_call.1} parent=1 // pred_fallthru
      _
    // Predicated region
    $region30: #{tpu_custom_call.1} parent=1 // pred_check
      _
    $region31: #{tpu_custom_call.1} parent=1 // pred_check_branch
      %84 = sbr.rel (0) target = $region33
    $region32: #{tpu_custom_call.1} parent=1 // pred_region
      %s86 = ssub.s32 16384, 16384
      %87 = vsyncadd [#allocation13], %s86
      %s88 = sshll.u32 [#allocation14], 4
      %s89 = int_to_ptr.vmem [resolvable:$true] %s88
      %94 = dma.hbm_to_vmem [thread:$0]  %s7, 16384, %s89, [#allocation13], 256, 256, 16
    $region33: #{tpu_custom_call.1} parent=1 // pred_fallthru
      _
    // Predicated region
    $region34: #{tpu_custom_call.1} parent=1 // pred_check
      _
    $region35: #{tpu_custom_call.1} parent=1 // pred_check_branch
      %96 = sbr.rel (0) target = $region37
    $region36: #{tpu_custom_call.1} parent=1 // pred_region
      _
    $region37: #{tpu_custom_call.1} parent=1 // pred_fallthru
      _
    // Predicated region
    $region38: #{tpu_custom_call.1} parent=1 // pred_check
      _
    $region39: #{tpu_custom_call.1} parent=1 // pred_check_branch
      %98 = sbr.rel (0) target = $region41
    $region40: #{tpu_custom_call.1} parent=1 // pred_region
      _
    $region41: #{tpu_custom_call.1} parent=1 // pred_fallthru
      _
    // Predicated region
    $region42: #{tpu_custom_call.1} parent=1 // pred_check
      _
    $region43: #{tpu_custom_call.1} parent=1 // pred_check_branch
      %100 = sbr.rel (0) target = $region45
    $region44: #{tpu_custom_call.1} parent=1 // pred_region
      _
    $region45: #{tpu_custom_call.1} parent=1 // pred_fallthru
      _
    // Predicated region
    $region46: #{tpu_custom_call.1} parent=1 // pred_check
      _
    $region47: #{tpu_custom_call.1} parent=1 // pred_check_branch
      %102 = sbr.rel (0) target = $region49
    $region48: #{tpu_custom_call.1} parent=1 // pred_region
      %103 = dma.done [#allocation7], 16
    $region49: #{tpu_custom_call.1} parent=1 // pred_fallthru
      _
    // Predicated region
    $region50: #{tpu_custom_call.1} parent=1 // pred_check
      _
    $region51: #{tpu_custom_call.1} parent=1 // pred_check_branch
      %105 = sbr.rel (0) target = $region53
    $region52: #{tpu_custom_call.1} parent=1 // pred_region
      %106 = dma.done [#allocation5], 128
    $region53: #{tpu_custom_call.1} parent=1 // pred_fallthru
      _
    // Predicated region
    $region54: #{tpu_custom_call.1} parent=1 // pred_check
      _
    $region55: #{tpu_custom_call.1} parent=1 // pred_check_branch
      %108 = sbr.rel (0) target = $region57
    $region56: #{tpu_custom_call.1} parent=1 // pred_region
      %109 = dma.done [#allocation10], 1024
    $region57: #{tpu_custom_call.1} parent=1 // pred_fallthru
      _
    // Predicated region
    $region58: #{tpu_custom_call.1} parent=1 // pred_check
      _
    $region59: #{tpu_custom_call.1} parent=1 // pred_check_branch
      %111 = sbr.rel (0) target = $region61
    $region60: #{tpu_custom_call.1} parent=1 // pred_region
      %112 = dma.done [#allocation10], 2048
    $region61: #{tpu_custom_call.1} parent=1 // pred_fallthru
      _
    // Predicated region
    $region62: #{tpu_custom_call.1} parent=1 // pred_check
      _
    $region63: #{tpu_custom_call.1} parent=1 // pred_check_branch
      %114 = sbr.rel (0) target = $region65
    $region64: #{tpu_custom_call.1} parent=1 // pred_region
      %115 = dma.done [#allocation13], 16384
    $region65: #{tpu_custom_call.1} parent=1 // pred_fallthru
      _
    // Predicated region
    $region66: #{tpu_custom_call.1} parent=1 // pred_check
      _
    $region67: #{tpu_custom_call.1} parent=1 // pred_check_branch
      %117 = sbr.rel (0) target = $region69
    $region68: #{tpu_custom_call.1} parent=1 // pred_region
      %118 = dma.done [#allocation13], 16384
    $region69: #{tpu_custom_call.1} parent=1 // pred_fallthru
      _
    %119 = sfence
    %s121 = sld [smem:[#allocation4]]
    %s122 = sshra.s32 %s121, 3
    %s123 = sand.u32 %s121, 7
    %s124 = sshra.s32 %s121, 3
    %s125 = sand.u32 %s121, 7
    %s126 = smul.u32 %s122, 4
    %s127 = smul.u32 %s126, 8
    %s128 = sadd.s32 %s127, %s125
    %s129 = scalar_lea.vmem [#allocation9], %s128
    %v130 = vld [vmem:[%s129] ss:$8 sm:$0xf]
    %v131 = vlaneseq
    %vm132 = vcmp.ge.s32.totalorder %v131, 0
    %vm133 = vcmp.lt.s32.totalorder %v131, 512
    %vm134 = vmand %vm132, %vm133
    %135 = vst.msk [vmem:[#allocation2] ss:$8 sm:$0xf] %vm134, %v130
    %136 = vst.msk [vmem:[#allocation2] ss:$8 sm:$0x0] %vm134, %v130
    %s137 = sld [smem:[#allocation4 + $0x1]]
    %s138 = sshra.s32 %s137, 3
    %s139 = sand.u32 %s137, 7
    %s140 = sshra.s32 %s137, 3
    %s141 = sand.u32 %s137, 7
    %s142 = smul.u32 %s138, 4
    %s143 = smul.u32 %s142, 8
    %s144 = sadd.s32 %s143, %s141
    %s145 = scalar_lea.vmem [#allocation9], %s144
    %v146 = vld [vmem:[%s145] ss:$8 sm:$0xf]
    %s147 = scalar_lea.vmem [#allocation2], 1
    %148 = vst.msk [vmem:[%s147] ss:$8 sm:$0xf] %vm134, %v146
    %149 = vst.msk [vmem:[%s147] ss:$8 sm:$0x0] %vm134, %v146
    %s150 = sld [smem:[#allocation4 + $0x2]]
    %s151 = sshra.s32 %s150, 3
    %s152 = sand.u32 %s150, 7
    %s153 = sshra.s32 %s150, 3
    %s154 = sand.u32 %s150, 7
    %s155 = smul.u32 %s151, 4
    %s156 = smul.u32 %s155, 8
    %s157 = sadd.s32 %s156, %s154
    %s158 = scalar_lea.vmem [#allocation9], %s157
    %v159 = vld [vmem:[%s158] ss:$8 sm:$0xf]
    %s160 = scalar_lea.vmem [#allocation2], 2
    %161 = vst.msk [vmem:[%s160] ss:$8 sm:$0xf] %vm134, %v159
    %162 = vst.msk [vmem:[%s160] ss:$8 sm:$0x0] %vm134, %v159
    %s163 = sld [smem:[#allocation4 + $0x3]]
    %s164 = sshra.s32 %s163, 3
    %s165 = sand.u32 %s163, 7
    %s166 = sshra.s32 %s163, 3
    %s167 = sand.u32 %s163, 7
    %s168 = smul.u32 %s164, 4
    %s169 = smul.u32 %s168, 8
    %s170 = sadd.s32 %s169, %s167
    %s171 = scalar_lea.vmem [#allocation9], %s170
    %v172 = vld [vmem:[%s171] ss:$8 sm:$0xf]
    %s173 = scalar_lea.vmem [#allocation2], 3
    %174 = vst.msk [vmem:[%s173] ss:$8 sm:$0xf] %vm134, %v172
    %175 = vst.msk [vmem:[%s173] ss:$8 sm:$0x0] %vm134, %v172
    %s176 = sld [smem:[#allocation4 + $0x4]]
    %s177 = sshra.s32 %s176, 3
    %s178 = sand.u32 %s176, 7
    %s179 = sshra.s32 %s176, 3
    %s180 = sand.u32 %s176, 7
    %s181 = smul.u32 %s177, 4
    %s182 = smul.u32 %s181, 8
    %s183 = sadd.s32 %s182, %s180
    %s184 = scalar_lea.vmem [#allocation9], %s183
    %v185 = vld [vmem:[%s184] ss:$8 sm:$0xf]
    %s186 = scalar_lea.vmem [#allocation2], 4
    %187 = vst.msk [vmem:[%s186] ss:$8 sm:$0xf] %vm134, %v185
    %188 = vst.msk [vmem:[%s186] ss:$8 sm:$0x0] %vm134, %v185
    %s189 = sld [smem:[#allocation4 + $0x5]]
    %s190 = sshra.s32 %s189, 3
    %s191 = sand.u32 %s189, 7
    %s192 = sshra.s32 %s189, 3
    %s193 = sand.u32 %s189, 7
    %s194 = smul.u32 %s190, 4
    %s195 = smul.u32 %s194, 8
    %s196 = sadd.s32 %s195, %s193
    %s197 = scalar_lea.vmem [#allocation9], %s196
    %v198 = vld [vmem:[%s197] ss:$8 sm:$0xf]
    %s199 = scalar_lea.vmem [#allocation2], 5
    %200 = vst.msk [vmem:[%s199] ss:$8 sm:$0xf] %vm134, %v198
    %201 = vst.msk [vmem:[%s199] ss:$8 sm:$0x0] %vm134, %v198
    %s202 = sld [smem:[#allocation4 + $0x6]]
    %s203 = sshra.s32 %s202, 3
    %s204 = sand.u32 %s202, 7
    %s205 = sshra.s32 %s202, 3
    %s206 = sand.u32 %s202, 7
    %s207 = smul.u32 %s203, 4
    %s208 = smul.u32 %s207, 8
    %s209 = sadd.s32 %s208, %s206
    %s210 = scalar_lea.vmem [#allocation9], %s209
    %v211 = vld [vmem:[%s210] ss:$8 sm:$0xf]
    %s212 = scalar_lea.vmem [#allocation2], 6
    %213 = vst.msk [vmem:[%s212] ss:$8 sm:$0xf] %vm134, %v211
    %214 = vst.msk [vmem:[%s212] ss:$8 sm:$0x0] %vm134, %v211
    %s215 = sld [smem:[#allocation4 + $0x7]]
    %s216 = sshra.s32 %s215, 3
    %s217 = sand.u32 %s215, 7
    %s218 = sshra.s32 %s215, 3
    %s219 = sand.u32 %s215, 7
    %s220 = smul.u32 %s216, 4
    %s221 = smul.u32 %s220, 8
    %s222 = sadd.s32 %s221, %s219
    %s223 = scalar_lea.vmem [#allocation9], %s222
    %v224 = vld [vmem:[%s223] ss:$8 sm:$0xf]
    %s225 = scalar_lea.vmem [#allocation2], 7
    %226 = vst.msk [vmem:[%s225] ss:$8 sm:$0xf] %vm134, %v224
    %227 = vst.msk [vmem:[%s225] ss:$8 sm:$0x0] %vm134, %v224
    %v228 = vld [vmem:[#allocation8] sm:$0xff]
    %v229 = vpack.c.bf16 %v228, %v228
    %v230 = vld [vmem:[#allocation11] sm:$0xff]
    %v231 = vld [vmem:[#allocation11 + $0x8] sm:$0xff]
    %v232 = vld [vmem:[#allocation11 + $0x10] sm:$0xff]
    %v233 = vld [vmem:[#allocation11 + $0x18] sm:$0xff]
    %v234 = vld [vmem:[#allocation11 + $0x20] sm:$0xff]
    %v235 = vld [vmem:[#allocation11 + $0x28] sm:$0xff]
    %v236 = vld [vmem:[#allocation11 + $0x30] sm:$0xff]
    %v237 = vld [vmem:[#allocation11 + $0x38] sm:$0xff]
    %v238 = vld [vmem:[#allocation11 + $0x40] sm:$0xff]
    %v239 = vld [vmem:[#allocation11 + $0x48] sm:$0xff]
    %v240 = vld [vmem:[#allocation11 + $0x50] sm:$0xff]
    %v241 = vld [vmem:[#allocation11 + $0x58] sm:$0xff]
    %v242 = vld [vmem:[#allocation11 + $0x60] sm:$0xff]
    %v243 = vld [vmem:[#allocation11 + $0x68] sm:$0xff]
    %v244 = vld [vmem:[#allocation11 + $0x70] sm:$0xff]
    %v245 = vld [vmem:[#allocation11 + $0x78] sm:$0xff]
    %v246 = vld [vmem:[#allocation2] sm:$0xff]
    %v247 = vld [vmem:[#allocation2 + $0x8] sm:$0xff]
    %v248 = vld [vmem:[#allocation2 + $0x10] sm:$0xff]
    %v249 = vld [vmem:[#allocation2 + $0x18] sm:$0xff]
    %v266 = vunpack.c.l.b16 %v230
    %v267 = vunpack.c.h.b16 %v230
    %v268 = vunpack.c.l.b16 %v231
    %v269 = vunpack.c.h.b16 %v231
    %v270 = vunpack.c.l.b16 %v232
    %v271 = vunpack.c.h.b16 %v232
    %v272 = vunpack.c.l.b16 %v233
    %v273 = vunpack.c.h.b16 %v233
    %v274 = vunpack.c.l.b16 %v234
    %v275 = vunpack.c.h.b16 %v234
    %v276 = vunpack.c.l.b16 %v235
    %v277 = vunpack.c.h.b16 %v235
    %v278 = vunpack.c.l.b16 %v236
    %v279 = vunpack.c.h.b16 %v236
    %v280 = vunpack.c.l.b16 %v237
    %v281 = vunpack.c.h.b16 %v237
    %v282 = vunpack.c.l.b16 %v238
    %v283 = vunpack.c.h.b16 %v238
    %v284 = vunpack.c.l.b16 %v239
    %v285 = vunpack.c.h.b16 %v239
    %v286 = vunpack.c.l.b16 %v240
    %v287 = vunpack.c.h.b16 %v240
    %v288 = vunpack.c.l.b16 %v241
    %v289 = vunpack.c.h.b16 %v241
    %v290 = vunpack.c.l.b16 %v242
    %v291 = vunpack.c.h.b16 %v242
    %v292 = vunpack.c.l.b16 %v243
    %v293 = vunpack.c.h.b16 %v243
    %v294 = vunpack.c.l.b16 %v244
    %v295 = vunpack.c.h.b16 %v244
    %v296 = vunpack.c.l.b16 %v245
    %v297 = vunpack.c.h.b16 %v245
    %v298 = vpack.c.b16 %v270, %v266
    %v299 = vpack.c.b16 %v271, %v267
    %v300 = vpack.c.b16 %v272, %v268
    %v301 = vpack.c.b16 %v273, %v269
    %v302 = vpack.c.b16 %v278, %v274
    %v303 = vpack.c.b16 %v279, %v275
    %v304 = vpack.c.b16 %v280, %v276
    %v305 = vpack.c.b16 %v281, %v277
    %v306 = vpack.c.b16 %v286, %v282
    %v307 = vpack.c.b16 %v287, %v283
    %v308 = vpack.c.b16 %v288, %v284
    %v309 = vpack.c.b16 %v289, %v285
    %v310 = vpack.c.b16 %v294, %v290
    %v311 = vpack.c.b16 %v295, %v291
    %v312 = vpack.c.b16 %v296, %v292
    %v313 = vpack.c.b16 %v297, %v293
    %vm330 = vcmask 523264
    %v332 = vsel %vm330, %v229, 0
    %334 = vmatprep.subr.bf16.mxu0 %v299
    %335 = vmatpush1.bf16.msra.mxu0 %v298
    %336 = vmatprep.subr.bf16.mxu0 %v303
    %337 = vmatpush1.bf16.msra.mxu0 %v302
    %338 = vmatprep.subr.bf16.mxu0 %v307
    %339 = vmatpush1.bf16.msra.mxu0 %v306
    %340 = vmatprep.subr.bf16.mxu0 %v311
    %341 = vmatpush1.bf16.msra.mxu0 %v310
    %342 = vmatprep.subr.bf16.mxu0 0
    %343 = vmatpush1.bf16.msra.mxu0 0
    %344 = vmatprep.subr.bf16.mxu0 0
    %345 = vmatpush1.bf16.msra.mxu0 0
    %346 = vmatprep.subr.bf16.mxu0 0
    %347 = vmatpush1.bf16.msra.mxu0 0
    %348 = vmatprep.subr.bf16.mxu0 0
    %349 = vmatpush1.bf16.msra.mxu0 0
    %350 = vmatprep.subr.bf16.mxu0 0
    %351 = vmatpush1.bf16.msra.mxu0 0
    %352 = vmatprep.subr.bf16.mxu0 0
    %353 = vmatpush1.bf16.msra.mxu0 0
    %354 = vmatprep.subr.bf16.mxu0 0
    %355 = vmatpush1.bf16.msra.mxu0 0
    %356 = vmatprep.subr.bf16.mxu0 0
    %357 = vmatpush1.bf16.msra.mxu0 0
    %358 = vmatprep.subr.bf16.mxu0 0
    %359 = vmatpush1.bf16.msra.mxu0 0
    %360 = vmatprep.subr.bf16.mxu0 0
    %361 = vmatpush1.bf16.msra.mxu0 0
    %362 = vmatprep.subr.bf16.mxu0 0
    %363 = vmatpush1.bf16.msra.mxu0 0
    %364 = vmatprep.subr.bf16.mxu0 0
    %365 = vmatpush1.bf16.msra.mxu0 0
    %366 = vmatprep.mubr.bf16.mxu0 0
    %367 = vmatmul.mubr.bf16.gmra.mrb[0].mxu0 %v332
    %v368 = vpop.f32.mrb[0].mxu0
    %v369 = vadd.f32 %v246, %v368
    %v370 = vpop.f32.mrb[0].mxu0
    %v371 = vadd.f32 %v247, %v370
    %v372 = vpop.f32.mrb[0].mxu0
    %v373 = vpop.f32.mrb[0].mxu0
    %374 = vdwg.mxu0
    %375 = vmatprep.subr.bf16.mxu0 %v301
    %376 = vmatpush1.bf16.msra.mxu0 %v300
    %377 = vmatprep.subr.bf16.mxu0 %v305
    %378 = vmatpush1.bf16.msra.mxu0 %v304
    %379 = vmatprep.subr.bf16.mxu0 %v309
    %380 = vmatpush1.bf16.msra.mxu0 %v308
    %381 = vmatprep.subr.bf16.mxu0 %v313
    %382 = vmatpush1.bf16.msra.mxu0 %v312
    %383 = vmatprep.subr.bf16.mxu0 0
    %384 = vmatpush1.bf16.msra.mxu0 0
    %385 = vmatprep.subr.bf16.mxu0 0
    %386 = vmatpush1.bf16.msra.mxu0 0
    %387 = vmatprep.subr.bf16.mxu0 0
    %388 = vmatpush1.bf16.msra.mxu0 0
    %389 = vmatprep.subr.bf16.mxu0 0
    %390 = vmatpush1.bf16.msra.mxu0 0
    %391 = vmatprep.subr.bf16.mxu0 0
    %392 = vmatpush1.bf16.msra.mxu0 0
    %393 = vmatprep.subr.bf16.mxu0 0
    %394 = vmatpush1.bf16.msra.mxu0 0
    %395 = vmatprep.subr.bf16.mxu0 0
    %396 = vmatpush1.bf16.msra.mxu0 0
    %397 = vmatprep.subr.bf16.mxu0 0
    %398 = vmatpush1.bf16.msra.mxu0 0
    %399 = vmatprep.subr.bf16.mxu0 0
    %400 = vmatpush1.bf16.msra.mxu0 0
    %401 = vmatprep.subr.bf16.mxu0 0
    %402 = vmatpush1.bf16.msra.mxu0 0
    %403 = vmatprep.subr.bf16.mxu0 0
    %404 = vmatpush1.bf16.msra.mxu0 0
    %405 = vmatprep.subr.bf16.mxu0 0
    %406 = vmatpush1.bf16.msra.mxu0 0
    %407 = vmatprep.mubr.bf16.mxu0 0
    %408 = vmatmul.mubr.bf16.gmra.mrb[0].mxu0 %v332
    %v409 = vpop.f32.mrb[0].mxu0
    %v410 = vadd.f32 %v248, %v409
    %v411 = vpop.f32.mrb[0].mxu0
    %v412 = vadd.f32 %v249, %v411
    %v413 = vpop.f32.mrb[0].mxu0
    %v414 = vpop.f32.mrb[0].mxu0
    %415 = vdwg.mxu0
    %v416 = vld [vmem:[%s4] sm:$0xf]
    %v418 = vlaneseq
    %v419 = vshrl.u32 %v418, 7
    %v420 = vsub.s32 0, %v419
    %v421 = vrot.slane %v416, %v420
    %v422 = vlaneseq
    %v423 = vshrl.u32 %v422, 7
    %v424 = vsub.s32 1, %v423
    %v425 = vrot.slane %v416, %v424
    %v426 = vlaneseq
    %v427 = vshrl.u32 %v426, 7
    %v428 = vsub.s32 2, %v427
    %v429 = vrot.slane %v416, %v428
    %v430 = vlaneseq
    %v431 = vshrl.u32 %v430, 7
    %v432 = vsub.s32 3, %v431
    %v433 = vrot.slane %v416, %v432
    %v438 = vadd.f32 %v369, %v421
    %v439 = vadd.f32 %v371, %v425
    %v440 = vadd.f32 %v410, %v429
    %v441 = vadd.f32 %v412, %v433
    %v442 = vmul.f32 %v438, 0.2
    %v443 = vmul.f32 %v439, 0.2
    %v444 = vmul.f32 %v440, 0.2
    %v445 = vmul.f32 %v441, 0.2
    %v446 = vmax.f32 %v438, %v442
    %v447 = vmax.f32 %v439, %v443
    %v448 = vmax.f32 %v440, %v444
    %v449 = vmax.f32 %v441, %v445
    %v450 = vpack.c.bf16 %v446, %v446
    %v451 = vpack.c.bf16 %v447, %v447
    %v452 = vpack.c.bf16 %v448, %v448
    %v453 = vpack.c.bf16 %v449, %v449
    %v454 = vld [vmem:[#allocation12] sm:$0xff]
    %v455 = vld [vmem:[#allocation12 + $0x8] sm:$0xff]
    %v456 = vld [vmem:[#allocation12 + $0x10] sm:$0xff]
    %v457 = vld [vmem:[#allocation12 + $0x18] sm:$0xff]
    %v458 = vld [vmem:[#allocation12 + $0x20] sm:$0xff]
    %v459 = vld [vmem:[#allocation12 + $0x28] sm:$0xff]
    %v460 = vld [vmem:[#allocation12 + $0x30] sm:$0xff]
    %v461 = vld [vmem:[#allocation12 + $0x38] sm:$0xff]
    %v462 = vld [vmem:[#allocation12 + $0x40] sm:$0xff]
    %v463 = vld [vmem:[#allocation12 + $0x48] sm:$0xff]
    %v464 = vld [vmem:[#allocation12 + $0x50] sm:$0xff]
    %v465 = vld [vmem:[#allocation12 + $0x58] sm:$0xff]
    %v466 = vld [vmem:[#allocation12 + $0x60] sm:$0xff]
    %v467 = vld [vmem:[#allocation12 + $0x68] sm:$0xff]
    %v468 = vld [vmem:[#allocation12 + $0x70] sm:$0xff]
    %v469 = vld [vmem:[#allocation12 + $0x78] sm:$0xff]
    %v470 = vld [vmem:[#allocation12 + $0x80] sm:$0xff]
    %v471 = vld [vmem:[#allocation12 + $0x88] sm:$0xff]
    %v472 = vld [vmem:[#allocation12 + $0x90] sm:$0xff]
    %v473 = vld [vmem:[#allocation12 + $0x98] sm:$0xff]
    %v474 = vld [vmem:[#allocation12 + $0xa0] sm:$0xff]
    %v475 = vld [vmem:[#allocation12 + $0xa8] sm:$0xff]
    %v476 = vld [vmem:[#allocation12 + $0xb0] sm:$0xff]
    %v477 = vld [vmem:[#allocation12 + $0xb8] sm:$0xff]
    %v478 = vld [vmem:[#allocation12 + $0xc0] sm:$0xff]
    %v479 = vld [vmem:[#allocation12 + $0xc8] sm:$0xff]
    %v480 = vld [vmem:[#allocation12 + $0xd0] sm:$0xff]
    %v481 = vld [vmem:[#allocation12 + $0xd8] sm:$0xff]
    %v482 = vld [vmem:[#allocation12 + $0xe0] sm:$0xff]
    %v483 = vld [vmem:[#allocation12 + $0xe8] sm:$0xff]
    %v484 = vld [vmem:[#allocation12 + $0xf0] sm:$0xff]
    %v485 = vld [vmem:[#allocation12 + $0xf8] sm:$0xff]
    %v486 = vld [vmem:[#allocation12 + $0x100] sm:$0xff]
    %v487 = vld [vmem:[#allocation12 + $0x108] sm:$0xff]
    %v488 = vld [vmem:[#allocation12 + $0x110] sm:$0xff]
    %v489 = vld [vmem:[#allocation12 + $0x118] sm:$0xff]
    %v490 = vld [vmem:[#allocation12 + $0x120] sm:$0xff]
    %v491 = vld [vmem:[#allocation12 + $0x128] sm:$0xff]
    %v492 = vld [vmem:[#allocation12 + $0x130] sm:$0xff]
    %v493 = vld [vmem:[#allocation12 + $0x138] sm:$0xff]
    %v494 = vld [vmem:[#allocation12 + $0x140] sm:$0xff]
    %v495 = vld [vmem:[#allocation12 + $0x148] sm:$0xff]
    %v496 = vld [vmem:[#allocation12 + $0x150] sm:$0xff]
    %v497 = vld [vmem:[#allocation12 + $0x158] sm:$0xff]
    %v498 = vld [vmem:[#allocation12 + $0x160] sm:$0xff]
    %v499 = vld [vmem:[#allocation12 + $0x168] sm:$0xff]
    %v500 = vld [vmem:[#allocation12 + $0x170] sm:$0xff]
    %v501 = vld [vmem:[#allocation12 + $0x178] sm:$0xff]
    %v502 = vld [vmem:[#allocation12 + $0x180] sm:$0xff]
    %v503 = vld [vmem:[#allocation12 + $0x188] sm:$0xff]
    %v504 = vld [vmem:[#allocation12 + $0x190] sm:$0xff]
    %v505 = vld [vmem:[#allocation12 + $0x198] sm:$0xff]
    %v506 = vld [vmem:[#allocation12 + $0x1a0] sm:$0xff]
    %v507 = vld [vmem:[#allocation12 + $0x1a8] sm:$0xff]
    %v508 = vld [vmem:[#allocation12 + $0x1b0] sm:$0xff]
    %v509 = vld [vmem:[#allocation12 + $0x1b8] sm:$0xff]
    %v510 = vld [vmem:[#allocation12 + $0x1c0] sm:$0xff]
    %v511 = vld [vmem:[#allocation12 + $0x1c8] sm:$0xff]
    %v512 = vld [vmem:[#allocation12 + $0x1d0] sm:$0xff]
    %v513 = vld [vmem:[#allocation12 + $0x1d8] sm:$0xff]
    %v514 = vld [vmem:[#allocation12 + $0x1e0] sm:$0xff]
    %v515 = vld [vmem:[#allocation12 + $0x1e8] sm:$0xff]
    %v516 = vld [vmem:[#allocation12 + $0x1f0] sm:$0xff]
    %v517 = vld [vmem:[#allocation12 + $0x1f8] sm:$0xff]
    %v518 = vld [vmem:[#allocation12 + $0x200] sm:$0xff]
    %v519 = vld [vmem:[#allocation12 + $0x208] sm:$0xff]
    %v520 = vld [vmem:[#allocation12 + $0x210] sm:$0xff]
    %v521 = vld [vmem:[#allocation12 + $0x218] sm:$0xff]
    %v522 = vld [vmem:[#allocation12 + $0x220] sm:$0xff]
    %v523 = vld [vmem:[#allocation12 + $0x228] sm:$0xff]
    %v524 = vld [vmem:[#allocation12 + $0x230] sm:$0xff]
    %v525 = vld [vmem:[#allocation12 + $0x238] sm:$0xff]
    %v526 = vld [vmem:[#allocation12 + $0x240] sm:$0xff]
    %v527 = vld [vmem:[#allocation12 + $0x248] sm:$0xff]
    %v528 = vld [vmem:[#allocation12 + $0x250] sm:$0xff]
    %v529 = vld [vmem:[#allocation12 + $0x258] sm:$0xff]
    %v530 = vld [vmem:[#allocation12 + $0x260] sm:$0xff]
    %v531 = vld [vmem:[#allocation12 + $0x268] sm:$0xff]
    %v532 = vld [vmem:[#allocation12 + $0x270] sm:$0xff]
    %v533 = vld [vmem:[#allocation12 + $0x278] sm:$0xff]
    %v534 = vld [vmem:[#allocation12 + $0x280] sm:$0xff]
    %v535 = vld [vmem:[#allocation12 + $0x288] sm:$0xff]
    %v536 = vld [vmem:[#allocation12 + $0x290] sm:$0xff]
    %v537 = vld [vmem:[#allocation12 + $0x298] sm:$0xff]
    %v538 = vld [vmem:[#allocation12 + $0x2a0] sm:$0xff]
    %v539 = vld [vmem:[#allocation12 + $0x2a8] sm:$0xff]
    %v540 = vld [vmem:[#allocation12 + $0x2b0] sm:$0xff]
    %v541 = vld [vmem:[#allocation12 + $0x2b8] sm:$0xff]
    %v542 = vld [vmem:[#allocation12 + $0x2c0] sm:$0xff]
    %v543 = vld [vmem:[#allocation12 + $0x2c8] sm:$0xff]
    %v544 = vld [vmem:[#allocation12 + $0x2d0] sm:$0xff]
    %v545 = vld [vmem:[#allocation12 + $0x2d8] sm:$0xff]
    %v546 = vld [vmem:[#allocation12 + $0x2e0] sm:$0xff]
    %v547 = vld [vmem:[#allocation12 + $0x2e8] sm:$0xff]
    %v548 = vld [vmem:[#allocation12 + $0x2f0] sm:$0xff]
    %v549 = vld [vmem:[#allocation12 + $0x2f8] sm:$0xff]
    %v550 = vld [vmem:[#allocation12 + $0x300] sm:$0xff]
    %v551 = vld [vmem:[#allocation12 + $0x308] sm:$0xff]
    %v552 = vld [vmem:[#allocation12 + $0x310] sm:$0xff]
    %v553 = vld [vmem:[#allocation12 + $0x318] sm:$0xff]
    %v554 = vld [vmem:[#allocation12 + $0x320] sm:$0xff]
    %v555 = vld [vmem:[#allocation12 + $0x328] sm:$0xff]
    %v556 = vld [vmem:[#allocation12 + $0x330] sm:$0xff]
    %v557 = vld [vmem:[#allocation12 + $0x338] sm:$0xff]
    %v558 = vld [vmem:[#allocation12 + $0x340] sm:$0xff]
    %v559 = vld [vmem:[#allocation12 + $0x348] sm:$0xff]
    %v560 = vld [vmem:[#allocation12 + $0x350] sm:$0xff]
    %v561 = vld [vmem:[#allocation12 + $0x358] sm:$0xff]
    %v562 = vld [vmem:[#allocation12 + $0x360] sm:$0xff]
    %v563 = vld [vmem:[#allocation12 + $0x368] sm:$0xff]
    %v564 = vld [vmem:[#allocation12 + $0x370] sm:$0xff]
    %v565 = vld [vmem:[#allocation12 + $0x378] sm:$0xff]
    %v566 = vld [vmem:[#allocation12 + $0x380] sm:$0xff]
    %v567 = vld [vmem:[#allocation12 + $0x388] sm:$0xff]
    %v568 = vld [vmem:[#allocation12 + $0x390] sm:$0xff]
    %v569 = vld [vmem:[#allocation12 + $0x398] sm:$0xff]
    %v570 = vld [vmem:[#allocation12 + $0x3a0] sm:$0xff]
    %v571 = vld [vmem:[#allocation12 + $0x3a8] sm:$0xff]
    %v572 = vld [vmem:[#allocation12 + $0x3b0] sm:$0xff]
    %v573 = vld [vmem:[#allocation12 + $0x3b8] sm:$0xff]
    %v574 = vld [vmem:[#allocation12 + $0x3c0] sm:$0xff]
    %v575 = vld [vmem:[#allocation12 + $0x3c8] sm:$0xff]
    %v576 = vld [vmem:[#allocation12 + $0x3d0] sm:$0xff]
    %v577 = vld [vmem:[#allocation12 + $0x3d8] sm:$0xff]
    %v578 = vld [vmem:[#allocation12 + $0x3e0] sm:$0xff]
    %v579 = vld [vmem:[#allocation12 + $0x3e8] sm:$0xff]
    %v580 = vld [vmem:[#allocation12 + $0x3f0] sm:$0xff]
    %v581 = vld [vmem:[#allocation12 + $0x3f8] sm:$0xff]
    %v582 = vld [vmem:[%s6] sm:$0xf]
    %v584 = vlaneseq
    %v585 = vshrl.u32 %v584, 7
    %v586 = vsub.s32 0, %v585
    %v587 = vrot.slane %v582, %v586
    %v588 = vlaneseq
    %v589 = vshrl.u32 %v588, 7
    %v590 = vsub.s32 1, %v589
    %v591 = vrot.slane %v582, %v590
    %v592 = vlaneseq
    %v593 = vshrl.u32 %v592, 7
    %v594 = vsub.s32 2, %v593
    %v595 = vrot.slane %v582, %v594
    %v596 = vlaneseq
    %v597 = vshrl.u32 %v596, 7
    %v598 = vsub.s32 3, %v597
    %v599 = vrot.slane %v582, %v598
    %v732 = vunpack.c.l.b16 %v454
    %v733 = vunpack.c.h.b16 %v454
    %v734 = vunpack.c.l.b16 %v455
    %v735 = vunpack.c.h.b16 %v455
    %v736 = vunpack.c.l.b16 %v456
    %v737 = vunpack.c.h.b16 %v456
    %v738 = vunpack.c.l.b16 %v457
    %v739 = vunpack.c.h.b16 %v457
    %v740 = vunpack.c.l.b16 %v458
    %v741 = vunpack.c.h.b16 %v458
    %v742 = vunpack.c.l.b16 %v459
    %v743 = vunpack.c.h.b16 %v459
    %v744 = vunpack.c.l.b16 %v460
    %v745 = vunpack.c.h.b16 %v460
    %v746 = vunpack.c.l.b16 %v461
    %v747 = vunpack.c.h.b16 %v461
    %v748 = vunpack.c.l.b16 %v462
    %v749 = vunpack.c.h.b16 %v462
    %v750 = vunpack.c.l.b16 %v463
    %v751 = vunpack.c.h.b16 %v463
    %v752 = vunpack.c.l.b16 %v464
    %v753 = vunpack.c.h.b16 %v464
    %v754 = vunpack.c.l.b16 %v465
    %v755 = vunpack.c.h.b16 %v465
    %v756 = vunpack.c.l.b16 %v466
    %v757 = vunpack.c.h.b16 %v466
    %v758 = vunpack.c.l.b16 %v467
    %v759 = vunpack.c.h.b16 %v467
    %v760 = vunpack.c.l.b16 %v468
    %v761 = vunpack.c.h.b16 %v468
    %v762 = vunpack.c.l.b16 %v469
    %v763 = vunpack.c.h.b16 %v469
    %v764 = vunpack.c.l.b16 %v470
    %v765 = vunpack.c.h.b16 %v470
    %v766 = vunpack.c.l.b16 %v471
    %v767 = vunpack.c.h.b16 %v471
    %v768 = vunpack.c.l.b16 %v472
    %v769 = vunpack.c.h.b16 %v472
    %v770 = vunpack.c.l.b16 %v473
    %v771 = vunpack.c.h.b16 %v473
    %v772 = vunpack.c.l.b16 %v474
    %v773 = vunpack.c.h.b16 %v474
    %v774 = vunpack.c.l.b16 %v475
    %v775 = vunpack.c.h.b16 %v475
    %v776 = vunpack.c.l.b16 %v476
    %v777 = vunpack.c.h.b16 %v476
    %v778 = vunpack.c.l.b16 %v477
    %v779 = vunpack.c.h.b16 %v477
    %v780 = vunpack.c.l.b16 %v478
    %v781 = vunpack.c.h.b16 %v478
    %v782 = vunpack.c.l.b16 %v479
    %v783 = vunpack.c.h.b16 %v479
    %v784 = vunpack.c.l.b16 %v480
    %v785 = vunpack.c.h.b16 %v480
    %v786 = vunpack.c.l.b16 %v481
    %v787 = vunpack.c.h.b16 %v481
    %v788 = vunpack.c.l.b16 %v482
    %v789 = vunpack.c.h.b16 %v482
    %v790 = vunpack.c.l.b16 %v483
    %v791 = vunpack.c.h.b16 %v483
    %v792 = vunpack.c.l.b16 %v484
    %v793 = vunpack.c.h.b16 %v484
    %v794 = vunpack.c.l.b16 %v485
    %v795 = vunpack.c.h.b16 %v485
    %v796 = vunpack.c.l.b16 %v486
    %v797 = vunpack.c.h.b16 %v486
    %v798 = vunpack.c.l.b16 %v487
    %v799 = vunpack.c.h.b16 %v487
    %v800 = vunpack.c.l.b16 %v488
    %v801 = vunpack.c.h.b16 %v488
    %v802 = vunpack.c.l.b16 %v489
    %v803 = vunpack.c.h.b16 %v489
    %v804 = vunpack.c.l.b16 %v490
    %v805 = vunpack.c.h.b16 %v490
    %v806 = vunpack.c.l.b16 %v491
    %v807 = vunpack.c.h.b16 %v491
    %v808 = vunpack.c.l.b16 %v492
    %v809 = vunpack.c.h.b16 %v492
    %v810 = vunpack.c.l.b16 %v493
    %v811 = vunpack.c.h.b16 %v493
    %v812 = vunpack.c.l.b16 %v494
    %v813 = vunpack.c.h.b16 %v494
    %v814 = vunpack.c.l.b16 %v495
    %v815 = vunpack.c.h.b16 %v495
    %v816 = vunpack.c.l.b16 %v496
    %v817 = vunpack.c.h.b16 %v496
    %v818 = vunpack.c.l.b16 %v497
    %v819 = vunpack.c.h.b16 %v497
    %v820 = vunpack.c.l.b16 %v498
    %v821 = vunpack.c.h.b16 %v498
    %v822 = vunpack.c.l.b16 %v499
    %v823 = vunpack.c.h.b16 %v499
    %v824 = vunpack.c.l.b16 %v500
    %v825 = vunpack.c.h.b16 %v500
    %v826 = vunpack.c.l.b16 %v501
    %v827 = vunpack.c.h.b16 %v501
    %v828 = vunpack.c.l.b16 %v502
    %v829 = vunpack.c.h.b16 %v502
    %v830 = vunpack.c.l.b16 %v503
    %v831 = vunpack.c.h.b16 %v503
    %v832 = vunpack.c.l.b16 %v504
    %v833 = vunpack.c.h.b16 %v504
    %v834 = vunpack.c.l.b16 %v505
    %v835 = vunpack.c.h.b16 %v505
    %v836 = vunpack.c.l.b16 %v506
    %v837 = vunpack.c.h.b16 %v506
    %v838 = vunpack.c.l.b16 %v507
    %v839 = vunpack.c.h.b16 %v507
    %v840 = vunpack.c.l.b16 %v508
    %v841 = vunpack.c.h.b16 %v508
    %v842 = vunpack.c.l.b16 %v509
    %v843 = vunpack.c.h.b16 %v509
    %v844 = vunpack.c.l.b16 %v510
    %v845 = vunpack.c.h.b16 %v510
    %v846 = vunpack.c.l.b16 %v511
    %v847 = vunpack.c.h.b16 %v511
    %v848 = vunpack.c.l.b16 %v512
    %v849 = vunpack.c.h.b16 %v512
    %v850 = vunpack.c.l.b16 %v513
    %v851 = vunpack.c.h.b16 %v513
    %v852 = vunpack.c.l.b16 %v514
    %v853 = vunpack.c.h.b16 %v514
    %v854 = vunpack.c.l.b16 %v515
    %v855 = vunpack.c.h.b16 %v515
    %v856 = vunpack.c.l.b16 %v516
    %v857 = vunpack.c.h.b16 %v516
    %v858 = vunpack.c.l.b16 %v517
    %v859 = vunpack.c.h.b16 %v517
    %v860 = vunpack.c.l.b16 %v518
    %v861 = vunpack.c.h.b16 %v518
    %v862 = vunpack.c.l.b16 %v519
    %v863 = vunpack.c.h.b16 %v519
    %v864 = vunpack.c.l.b16 %v520
    %v865 = vunpack.c.h.b16 %v520
    %v866 = vunpack.c.l.b16 %v521
    %v867 = vunpack.c.h.b16 %v521
    %v868 = vunpack.c.l.b16 %v522
    %v869 = vunpack.c.h.b16 %v522
    %v870 = vunpack.c.l.b16 %v523
    %v871 = vunpack.c.h.b16 %v523
    %v872 = vunpack.c.l.b16 %v524
    %v873 = vunpack.c.h.b16 %v524
    %v874 = vunpack.c.l.b16 %v525
    %v875 = vunpack.c.h.b16 %v525
    %v876 = vunpack.c.l.b16 %v526
    %v877 = vunpack.c.h.b16 %v526
    %v878 = vunpack.c.l.b16 %v527
    %v879 = vunpack.c.h.b16 %v527
    %v880 = vunpack.c.l.b16 %v528
    %v881 = vunpack.c.h.b16 %v528
    %v882 = vunpack.c.l.b16 %v529
    %v883 = vunpack.c.h.b16 %v529
    %v884 = vunpack.c.l.b16 %v530
    %v885 = vunpack.c.h.b16 %v530
    %v886 = vunpack.c.l.b16 %v531
    %v887 = vunpack.c.h.b16 %v531
    %v888 = vunpack.c.l.b16 %v532
    %v889 = vunpack.c.h.b16 %v532
    %v890 = vunpack.c.l.b16 %v533
    %v891 = vunpack.c.h.b16 %v533
    %v892 = vunpack.c.l.b16 %v534
    %v893 = vunpack.c.h.b16 %v534
    %v894 = vunpack.c.l.b16 %v535
    %v895 = vunpack.c.h.b16 %v535
    %v896 = vunpack.c.l.b16 %v536
    %v897 = vunpack.c.h.b16 %v536
    %v898 = vunpack.c.l.b16 %v537
    %v899 = vunpack.c.h.b16 %v537
    %v900 = vunpack.c.l.b16 %v538
    %v901 = vunpack.c.h.b16 %v538
    %v902 = vunpack.c.l.b16 %v539
    %v903 = vunpack.c.h.b16 %v539
    %v904 = vunpack.c.l.b16 %v540
    %v905 = vunpack.c.h.b16 %v540
    %v906 = vunpack.c.l.b16 %v541
    %v907 = vunpack.c.h.b16 %v541
    %v908 = vunpack.c.l.b16 %v542
    %v909 = vunpack.c.h.b16 %v542
    %v910 = vunpack.c.l.b16 %v543
    %v911 = vunpack.c.h.b16 %v543
    %v912 = vunpack.c.l.b16 %v544
    %v913 = vunpack.c.h.b16 %v544
    %v914 = vunpack.c.l.b16 %v545
    %v915 = vunpack.c.h.b16 %v545
    %v916 = vunpack.c.l.b16 %v546
    %v917 = vunpack.c.h.b16 %v546
    %v918 = vunpack.c.l.b16 %v547
    %v919 = vunpack.c.h.b16 %v547
    %v920 = vunpack.c.l.b16 %v548
    %v921 = vunpack.c.h.b16 %v548
    %v922 = vunpack.c.l.b16 %v549
    %v923 = vunpack.c.h.b16 %v549
    %v924 = vunpack.c.l.b16 %v550
    %v925 = vunpack.c.h.b16 %v550
    %v926 = vunpack.c.l.b16 %v551
    %v927 = vunpack.c.h.b16 %v551
    %v928 = vunpack.c.l.b16 %v552
    %v929 = vunpack.c.h.b16 %v552
    %v930 = vunpack.c.l.b16 %v553
    %v931 = vunpack.c.h.b16 %v553
    %v932 = vunpack.c.l.b16 %v554
    %v933 = vunpack.c.h.b16 %v554
    %v934 = vunpack.c.l.b16 %v555
    %v935 = vunpack.c.h.b16 %v555
    %v936 = vunpack.c.l.b16 %v556
    %v937 = vunpack.c.h.b16 %v556
    %v938 = vunpack.c.l.b16 %v557
    %v939 = vunpack.c.h.b16 %v557
    %v940 = vunpack.c.l.b16 %v558
    %v941 = vunpack.c.h.b16 %v558
    %v942 = vunpack.c.l.b16 %v559
    %v943 = vunpack.c.h.b16 %v559
    %v944 = vunpack.c.l.b16 %v560
    %v945 = vunpack.c.h.b16 %v560
    %v946 = vunpack.c.l.b16 %v561
    %v947 = vunpack.c.h.b16 %v561
    %v948 = vunpack.c.l.b16 %v562
    %v949 = vunpack.c.h.b16 %v562
    %v950 = vunpack.c.l.b16 %v563
    %v951 = vunpack.c.h.b16 %v563
    %v952 = vunpack.c.l.b16 %v564
    %v953 = vunpack.c.h.b16 %v564
    %v954 = vunpack.c.l.b16 %v565
    %v955 = vunpack.c.h.b16 %v565
    %v956 = vunpack.c.l.b16 %v566
    %v957 = vunpack.c.h.b16 %v566
    %v958 = vunpack.c.l.b16 %v567
    %v959 = vunpack.c.h.b16 %v567
    %v960 = vunpack.c.l.b16 %v568
    %v961 = vunpack.c.h.b16 %v568
    %v962 = vunpack.c.l.b16 %v569
    %v963 = vunpack.c.h.b16 %v569
    %v964 = vunpack.c.l.b16 %v570
    %v965 = vunpack.c.h.b16 %v570
    %v966 = vunpack.c.l.b16 %v571
    %v967 = vunpack.c.h.b16 %v571
    %v968 = vunpack.c.l.b16 %v572
    %v969 = vunpack.c.h.b16 %v572
    %v970 = vunpack.c.l.b16 %v573
    %v971 = vunpack.c.h.b16 %v573
    %v972 = vunpack.c.l.b16 %v574
    %v973 = vunpack.c.h.b16 %v574
    %v974 = vunpack.c.l.b16 %v575
    %v975 = vunpack.c.h.b16 %v575
    %v976 = vunpack.c.l.b16 %v576
    %v977 = vunpack.c.h.b16 %v576
    %v978 = vunpack.c.l.b16 %v577
    %v979 = vunpack.c.h.b16 %v577
    %v980 = vunpack.c.l.b16 %v578
    %v981 = vunpack.c.h.b16 %v578
    %v982 = vunpack.c.l.b16 %v579
    %v983 = vunpack.c.h.b16 %v579
    %v984 = vunpack.c.l.b16 %v580
    %v985 = vunpack.c.h.b16 %v580
    %v986 = vunpack.c.l.b16 %v581
    %v987 = vunpack.c.h.b16 %v581
    %v988 = vpack.c.b16 %v736, %v732
    %v989 = vpack.c.b16 %v737, %v733
    %v990 = vpack.c.b16 %v738, %v734
    %v991 = vpack.c.b16 %v739, %v735
    %v992 = vpack.c.b16 %v744, %v740
    %v993 = vpack.c.b16 %v745, %v741
    %v994 = vpack.c.b16 %v746, %v742
    %v995 = vpack.c.b16 %v747, %v743
    %v996 = vpack.c.b16 %v752, %v748
    %v997 = vpack.c.b16 %v753, %v749
    %v998 = vpack.c.b16 %v754, %v750
    %v999 = vpack.c.b16 %v755, %v751
    %v1000 = vpack.c.b16 %v760, %v756
    %v1001 = vpack.c.b16 %v761, %v757
    %v1002 = vpack.c.b16 %v762, %v758
    %v1003 = vpack.c.b16 %v763, %v759
    %v1004 = vpack.c.b16 %v768, %v764
    %v1005 = vpack.c.b16 %v769, %v765
    %v1006 = vpack.c.b16 %v770, %v766
    %v1007 = vpack.c.b16 %v771, %v767
    %v1008 = vpack.c.b16 %v776, %v772
    %v1009 = vpack.c.b16 %v777, %v773
    %v1010 = vpack.c.b16 %v778, %v774
    %v1011 = vpack.c.b16 %v779, %v775
    %v1012 = vpack.c.b16 %v784, %v780
    %v1013 = vpack.c.b16 %v785, %v781
    %v1014 = vpack.c.b16 %v786, %v782
    %v1015 = vpack.c.b16 %v787, %v783
    %v1016 = vpack.c.b16 %v792, %v788
    %v1017 = vpack.c.b16 %v793, %v789
    %v1018 = vpack.c.b16 %v794, %v790
    %v1019 = vpack.c.b16 %v795, %v791
    %v1020 = vpack.c.b16 %v800, %v796
    %v1021 = vpack.c.b16 %v801, %v797
    %v1022 = vpack.c.b16 %v802, %v798
    %v1023 = vpack.c.b16 %v803, %v799
    %v1024 = vpack.c.b16 %v808, %v804
    %v1025 = vpack.c.b16 %v809, %v805
    %v1026 = vpack.c.b16 %v810, %v806
    %v1027 = vpack.c.b16 %v811, %v807
    %v1028 = vpack.c.b16 %v816, %v812
    %v1029 = vpack.c.b16 %v817, %v813
    %v1030 = vpack.c.b16 %v818, %v814
    %v1031 = vpack.c.b16 %v819, %v815
    %v1032 = vpack.c.b16 %v824, %v820
    %v1033 = vpack.c.b16 %v825, %v821
    %v1034 = vpack.c.b16 %v826, %v822
    %v1035 = vpack.c.b16 %v827, %v823
    %v1036 = vpack.c.b16 %v832, %v828
    %v1037 = vpack.c.b16 %v833, %v829
    %v1038 = vpack.c.b16 %v834, %v830
    %v1039 = vpack.c.b16 %v835, %v831
    %v1040 = vpack.c.b16 %v840, %v836
    %v1041 = vpack.c.b16 %v841, %v837
    %v1042 = vpack.c.b16 %v842, %v838
    %v1043 = vpack.c.b16 %v843, %v839
    %v1044 = vpack.c.b16 %v848, %v844
    %v1045 = vpack.c.b16 %v849, %v845
    %v1046 = vpack.c.b16 %v850, %v846
    %v1047 = vpack.c.b16 %v851, %v847
    %v1048 = vpack.c.b16 %v856, %v852
    %v1049 = vpack.c.b16 %v857, %v853
    %v1050 = vpack.c.b16 %v858, %v854
    %v1051 = vpack.c.b16 %v859, %v855
    %v1052 = vpack.c.b16 %v864, %v860
    %v1053 = vpack.c.b16 %v865, %v861
    %v1054 = vpack.c.b16 %v866, %v862
    %v1055 = vpack.c.b16 %v867, %v863
    %v1056 = vpack.c.b16 %v872, %v868
    %v1057 = vpack.c.b16 %v873, %v869
    %v1058 = vpack.c.b16 %v874, %v870
    %v1059 = vpack.c.b16 %v875, %v871
    %v1060 = vpack.c.b16 %v880, %v876
    %v1061 = vpack.c.b16 %v881, %v877
    %v1062 = vpack.c.b16 %v882, %v878
    %v1063 = vpack.c.b16 %v883, %v879
    %v1064 = vpack.c.b16 %v888, %v884
    %v1065 = vpack.c.b16 %v889, %v885
    %v1066 = vpack.c.b16 %v890, %v886
    %v1067 = vpack.c.b16 %v891, %v887
    %v1068 = vpack.c.b16 %v896, %v892
    %v1069 = vpack.c.b16 %v897, %v893
    %v1070 = vpack.c.b16 %v898, %v894
    %v1071 = vpack.c.b16 %v899, %v895
    %v1072 = vpack.c.b16 %v904, %v900
    %v1073 = vpack.c.b16 %v905, %v901
    %v1074 = vpack.c.b16 %v906, %v902
    %v1075 = vpack.c.b16 %v907, %v903
    %v1076 = vpack.c.b16 %v912, %v908
    %v1077 = vpack.c.b16 %v913, %v909
    %v1078 = vpack.c.b16 %v914, %v910
    %v1079 = vpack.c.b16 %v915, %v911
    %v1080 = vpack.c.b16 %v920, %v916
    %v1081 = vpack.c.b16 %v921, %v917
    %v1082 = vpack.c.b16 %v922, %v918
    %v1083 = vpack.c.b16 %v923, %v919
    %v1084 = vpack.c.b16 %v928, %v924
    %v1085 = vpack.c.b16 %v929, %v925
    %v1086 = vpack.c.b16 %v930, %v926
    %v1087 = vpack.c.b16 %v931, %v927
    %v1088 = vpack.c.b16 %v936, %v932
    %v1089 = vpack.c.b16 %v937, %v933
    %v1090 = vpack.c.b16 %v938, %v934
    %v1091 = vpack.c.b16 %v939, %v935
    %v1092 = vpack.c.b16 %v944, %v940
    %v1093 = vpack.c.b16 %v945, %v941
    %v1094 = vpack.c.b16 %v946, %v942
    %v1095 = vpack.c.b16 %v947, %v943
    %v1096 = vpack.c.b16 %v952, %v948
    %v1097 = vpack.c.b16 %v953, %v949
    %v1098 = vpack.c.b16 %v954, %v950
    %v1099 = vpack.c.b16 %v955, %v951
    %v1100 = vpack.c.b16 %v960, %v956
    %v1101 = vpack.c.b16 %v961, %v957
    %v1102 = vpack.c.b16 %v962, %v958
    %v1103 = vpack.c.b16 %v963, %v959
    %v1104 = vpack.c.b16 %v968, %v964
    %v1105 = vpack.c.b16 %v969, %v965
    %v1106 = vpack.c.b16 %v970, %v966
    %v1107 = vpack.c.b16 %v971, %v967
    %v1108 = vpack.c.b16 %v976, %v972
    %v1109 = vpack.c.b16 %v977, %v973
    %v1110 = vpack.c.b16 %v978, %v974
    %v1111 = vpack.c.b16 %v979, %v975
    %v1112 = vpack.c.b16 %v984, %v980
    %v1113 = vpack.c.b16 %v985, %v981
    %v1114 = vpack.c.b16 %v986, %v982
    %v1115 = vpack.c.b16 %v987, %v983
    %1244 = vmatprep.subr.bf16.mxu0 %v989
    %1245 = vmatpush1.bf16.msra.mxu0 %v988
    %1246 = vmatprep.subr.bf16.mxu0 %v993
    %1247 = vmatpush1.bf16.msra.mxu0 %v992
    %1248 = vmatprep.subr.bf16.mxu0 %v997
    %1249 = vmatpush1.bf16.msra.mxu0 %v996
    %1250 = vmatprep.subr.bf16.mxu0 %v1001
    %1251 = vmatpush1.bf16.msra.mxu0 %v1000
    %1252 = vmatprep.subr.bf16.mxu0 %v1005
    %1253 = vmatpush1.bf16.msra.mxu0 %v1004
    %1254 = vmatprep.subr.bf16.mxu0 %v1009
    %1255 = vmatpush1.bf16.msra.mxu0 %v1008
    %1256 = vmatprep.subr.bf16.mxu0 %v1013
    %1257 = vmatpush1.bf16.msra.mxu0 %v1012
    %1258 = vmatprep.subr.bf16.mxu0 %v1017
    %1259 = vmatpush1.bf16.msra.mxu0 %v1016
    %1260 = vmatprep.subr.bf16.mxu0 %v1021
    %1261 = vmatpush1.bf16.msra.mxu0 %v1020
    %1262 = vmatprep.subr.bf16.mxu0 %v1025
    %1263 = vmatpush1.bf16.msra.mxu0 %v1024
    %1264 = vmatprep.subr.bf16.mxu0 %v1029
    %1265 = vmatpush1.bf16.msra.mxu0 %v1028
    %1266 = vmatprep.subr.bf16.mxu0 %v1033
    %1267 = vmatpush1.bf16.msra.mxu0 %v1032
    %1268 = vmatprep.subr.bf16.mxu0 %v1037
    %1269 = vmatpush1.bf16.msra.mxu0 %v1036
    %1270 = vmatprep.subr.bf16.mxu0 %v1041
    %1271 = vmatpush1.bf16.msra.mxu0 %v1040
    %1272 = vmatprep.subr.bf16.mxu0 %v1045
    %1273 = vmatpush1.bf16.msra.mxu0 %v1044
    %1274 = vmatprep.subr.bf16.mxu0 %v1049
    %1275 = vmatpush1.bf16.msra.mxu0 %v1048
    %1276 = vmatprep.mubr.bf16.mxu0 %v451
    %1277 = vmatmul.mubr.bf16.gmra.mrb[0].mxu0 %v450
    %v1278 = vpop.f32.mrb[0].mxu0
    %v1279 = vadd.f32 %v587, %v1278
    %v1280 = vpop.f32.mrb[0].mxu0
    %v1281 = vadd.f32 %v591, %v1280
    %v1282 = vpop.f32.mrb[0].mxu0
    %v1283 = vpop.f32.mrb[0].mxu0
    %1284 = vdwg.mxu0
    %1285 = vmatprep.subr.bf16.mxu0 %v1053
    %1286 = vmatpush1.bf16.msra.mxu0 %v1052
    %1287 = vmatprep.subr.bf16.mxu0 %v1057
    %1288 = vmatpush1.bf16.msra.mxu0 %v1056
    %1289 = vmatprep.subr.bf16.mxu0 %v1061
    %1290 = vmatpush1.bf16.msra.mxu0 %v1060
    %1291 = vmatprep.subr.bf16.mxu0 %v1065
    %1292 = vmatpush1.bf16.msra.mxu0 %v1064
    %1293 = vmatprep.subr.bf16.mxu0 %v1069
    %1294 = vmatpush1.bf16.msra.mxu0 %v1068
    %1295 = vmatprep.subr.bf16.mxu0 %v1073
    %1296 = vmatpush1.bf16.msra.mxu0 %v1072
    %1297 = vmatprep.subr.bf16.mxu0 %v1077
    %1298 = vmatpush1.bf16.msra.mxu0 %v1076
    %1299 = vmatprep.subr.bf16.mxu0 %v1081
    %1300 = vmatpush1.bf16.msra.mxu0 %v1080
    %1301 = vmatprep.subr.bf16.mxu0 %v1085
    %1302 = vmatpush1.bf16.msra.mxu0 %v1084
    %1303 = vmatprep.subr.bf16.mxu0 %v1089
    %1304 = vmatpush1.bf16.msra.mxu0 %v1088
    %1305 = vmatprep.subr.bf16.mxu0 %v1093
    %1306 = vmatpush1.bf16.msra.mxu0 %v1092
    %1307 = vmatprep.subr.bf16.mxu0 %v1097
    %1308 = vmatpush1.bf16.msra.mxu0 %v1096
    %1309 = vmatprep.subr.bf16.mxu0 %v1101
    %1310 = vmatpush1.bf16.msra.mxu0 %v1100
    %1311 = vmatprep.subr.bf16.mxu0 %v1105
    %1312 = vmatpush1.bf16.msra.mxu0 %v1104
    %1313 = vmatprep.subr.bf16.mxu0 %v1109
    %1314 = vmatpush1.bf16.msra.mxu0 %v1108
    %1315 = vmatprep.subr.bf16.mxu0 %v1113
    %1316 = vmatpush1.bf16.msra.mxu0 %v1112
    %1317 = vmatprep.mubr.bf16.mxu0 %v453
    %1318 = vmatmul.mubr.bf16.gmra.mrb[0].mxu0 %v452
    %v1319 = vpop.f32.mrb[0].mxu0
    %v1320 = vadd.f32 %v1279, %v1319
    %v1321 = vpop.f32.mrb[0].mxu0
    %v1322 = vadd.f32 %v1281, %v1321
    %v1323 = vpop.f32.mrb[0].mxu0
    %v1324 = vpop.f32.mrb[0].mxu0
    %1325 = vdwg.mxu0
    %1326 = vmatprep.subr.bf16.mxu0 %v991
    %1327 = vmatpush1.bf16.msra.mxu0 %v990
    %1328 = vmatprep.subr.bf16.mxu0 %v995
    %1329 = vmatpush1.bf16.msra.mxu0 %v994
    %1330 = vmatprep.subr.bf16.mxu0 %v999
    %1331 = vmatpush1.bf16.msra.mxu0 %v998
    %1332 = vmatprep.subr.bf16.mxu0 %v1003
    %1333 = vmatpush1.bf16.msra.mxu0 %v1002
    %1334 = vmatprep.subr.bf16.mxu0 %v1007
    %1335 = vmatpush1.bf16.msra.mxu0 %v1006
    %1336 = vmatprep.subr.bf16.mxu0 %v1011
    %1337 = vmatpush1.bf16.msra.mxu0 %v1010
    %1338 = vmatprep.subr.bf16.mxu0 %v1015
    %1339 = vmatpush1.bf16.msra.mxu0 %v1014
    %1340 = vmatprep.subr.bf16.mxu0 %v1019
    %1341 = vmatpush1.bf16.msra.mxu0 %v1018
    %1342 = vmatprep.subr.bf16.mxu0 %v1023
    %1343 = vmatpush1.bf16.msra.mxu0 %v1022
    %1344 = vmatprep.subr.bf16.mxu0 %v1027
    %1345 = vmatpush1.bf16.msra.mxu0 %v1026
    %1346 = vmatprep.subr.bf16.mxu0 %v1031
    %1347 = vmatpush1.bf16.msra.mxu0 %v1030
    %1348 = vmatprep.subr.bf16.mxu0 %v1035
    %1349 = vmatpush1.bf16.msra.mxu0 %v1034
    %1350 = vmatprep.subr.bf16.mxu0 %v1039
    %1351 = vmatpush1.bf16.msra.mxu0 %v1038
    %1352 = vmatprep.subr.bf16.mxu0 %v1043
    %1353 = vmatpush1.bf16.msra.mxu0 %v1042
    %1354 = vmatprep.subr.bf16.mxu0 %v1047
    %1355 = vmatpush1.bf16.msra.mxu0 %v1046
    %1356 = vmatprep.subr.bf16.mxu0 %v1051
    %1357 = vmatpush1.bf16.msra.mxu0 %v1050
    %1358 = vmatprep.mubr.bf16.mxu0 %v451
    %1359 = vmatmul.mubr.bf16.gmra.mrb[0].mxu0 %v450
    %v1360 = vpop.f32.mrb[0].mxu0
    %v1361 = vadd.f32 %v595, %v1360
    %v1362 = vpop.f32.mrb[0].mxu0
    %v1363 = vadd.f32 %v599, %v1362
    %v1364 = vpop.f32.mrb[0].mxu0
    %v1365 = vpop.f32.mrb[0].mxu0
    %1366 = vdwg.mxu0
    %1367 = vmatprep.subr.bf16.mxu0 %v1055
    %1368 = vmatpush1.bf16.msra.mxu0 %v1054
    %1369 = vmatprep.subr.bf16.mxu0 %v1059
    %1370 = vmatpush1.bf16.msra.mxu0 %v1058
    %1371 = vmatprep.subr.bf16.mxu0 %v1063
    %1372 = vmatpush1.bf16.msra.mxu0 %v1062
    %1373 = vmatprep.subr.bf16.mxu0 %v1067
    %1374 = vmatpush1.bf16.msra.mxu0 %v1066
    %1375 = vmatprep.subr.bf16.mxu0 %v1071
    %1376 = vmatpush1.bf16.msra.mxu0 %v1070
    %1377 = vmatprep.subr.bf16.mxu0 %v1075
    %1378 = vmatpush1.bf16.msra.mxu0 %v1074
    %1379 = vmatprep.subr.bf16.mxu0 %v1079
    %1380 = vmatpush1.bf16.msra.mxu0 %v1078
    %1381 = vmatprep.subr.bf16.mxu0 %v1083
    %1382 = vmatpush1.bf16.msra.mxu0 %v1082
    %1383 = vmatprep.subr.bf16.mxu0 %v1087
    %1384 = vmatpush1.bf16.msra.mxu0 %v1086
    %1385 = vmatprep.subr.bf16.mxu0 %v1091
    %1386 = vmatpush1.bf16.msra.mxu0 %v1090
    %1387 = vmatprep.subr.bf16.mxu0 %v1095
    %1388 = vmatpush1.bf16.msra.mxu0 %v1094
    %1389 = vmatprep.subr.bf16.mxu0 %v1099
    %1390 = vmatpush1.bf16.msra.mxu0 %v1098
    %1391 = vmatprep.subr.bf16.mxu0 %v1103
    %1392 = vmatpush1.bf16.msra.mxu0 %v1102
    %1393 = vmatprep.subr.bf16.mxu0 %v1107
    %1394 = vmatpush1.bf16.msra.mxu0 %v1106
    %1395 = vmatprep.subr.bf16.mxu0 %v1111
    %1396 = vmatpush1.bf16.msra.mxu0 %v1110
    %1397 = vmatprep.subr.bf16.mxu0 %v1115
    %1398 = vmatpush1.bf16.msra.mxu0 %v1114
    %1399 = vmatprep.mubr.bf16.mxu0 %v453
    %1400 = vmatmul.mubr.bf16.gmra.mrb[0].mxu0 %v452
    %v1401 = vpop.f32.mrb[0].mxu0
    %v1402 = vadd.f32 %v1361, %v1401
    %v1403 = vpop.f32.mrb[0].mxu0
    %v1404 = vadd.f32 %v1363, %v1403
    %v1405 = vpop.f32.mrb[0].mxu0
    %v1406 = vpop.f32.mrb[0].mxu0
    %1407 = vdwg.mxu0
    %v1408 = vmul.f32 %v1320, 0.2
    %v1409 = vmul.f32 %v1322, 0.2
    %v1410 = vmul.f32 %v1402, 0.2
    %v1411 = vmul.f32 %v1404, 0.2
    %v1412 = vmax.f32 %v1320, %v1408
    %v1413 = vmax.f32 %v1322, %v1409
    %v1414 = vmax.f32 %v1402, %v1410
    %v1415 = vmax.f32 %v1404, %v1411
    %v1416 = vpack.c.bf16 %v1412, %v1412
    %v1417 = vpack.c.bf16 %v1413, %v1413
    %v1418 = vpack.c.bf16 %v1414, %v1414
    %v1419 = vpack.c.bf16 %v1415, %v1415
    %v1420 = vld [vmem:[#allocation14] sm:$0xff]
    %v1421 = vld [vmem:[#allocation14 + $0x8] sm:$0xff]
    %v1422 = vld [vmem:[#allocation14 + $0x10] sm:$0xff]
    %v1423 = vld [vmem:[#allocation14 + $0x18] sm:$0xff]
    %v1424 = vld [vmem:[#allocation14 + $0x20] sm:$0xff]
    %v1425 = vld [vmem:[#allocation14 + $0x28] sm:$0xff]
    %v1426 = vld [vmem:[#allocation14 + $0x30] sm:$0xff]
    %v1427 = vld [vmem:[#allocation14 + $0x38] sm:$0xff]
    %v1428 = vld [vmem:[#allocation14 + $0x40] sm:$0xff]
    %v1429 = vld [vmem:[#allocation14 + $0x48] sm:$0xff]
    %v1430 = vld [vmem:[#allocation14 + $0x50] sm:$0xff]
    %v1431 = vld [vmem:[#allocation14 + $0x58] sm:$0xff]
    %v1432 = vld [vmem:[#allocation14 + $0x60] sm:$0xff]
    %v1433 = vld [vmem:[#allocation14 + $0x68] sm:$0xff]
    %v1434 = vld [vmem:[#allocation14 + $0x70] sm:$0xff]
    %v1435 = vld [vmem:[#allocation14 + $0x78] sm:$0xff]
    %v1436 = vld [vmem:[#allocation14 + $0x80] sm:$0xff]
    %v1437 = vld [vmem:[#allocation14 + $0x88] sm:$0xff]
    %v1438 = vld [vmem:[#allocation14 + $0x90] sm:$0xff]
    %v1439 = vld [vmem:[#allocation14 + $0x98] sm:$0xff]
    %v1440 = vld [vmem:[#allocation14 + $0xa0] sm:$0xff]
    %v1441 = vld [vmem:[#allocation14 + $0xa8] sm:$0xff]
    %v1442 = vld [vmem:[#allocation14 + $0xb0] sm:$0xff]
    %v1443 = vld [vmem:[#allocation14 + $0xb8] sm:$0xff]
    %v1444 = vld [vmem:[#allocation14 + $0xc0] sm:$0xff]
    %v1445 = vld [vmem:[#allocation14 + $0xc8] sm:$0xff]
    %v1446 = vld [vmem:[#allocation14 + $0xd0] sm:$0xff]
    %v1447 = vld [vmem:[#allocation14 + $0xd8] sm:$0xff]
    %v1448 = vld [vmem:[#allocation14 + $0xe0] sm:$0xff]
    %v1449 = vld [vmem:[#allocation14 + $0xe8] sm:$0xff]
    %v1450 = vld [vmem:[#allocation14 + $0xf0] sm:$0xff]
    %v1451 = vld [vmem:[#allocation14 + $0xf8] sm:$0xff]
    %v1452 = vld [vmem:[#allocation14 + $0x100] sm:$0xff]
    %v1453 = vld [vmem:[#allocation14 + $0x108] sm:$0xff]
    %v1454 = vld [vmem:[#allocation14 + $0x110] sm:$0xff]
    %v1455 = vld [vmem:[#allocation14 + $0x118] sm:$0xff]
    %v1456 = vld [vmem:[#allocation14 + $0x120] sm:$0xff]
    %v1457 = vld [vmem:[#allocation14 + $0x128] sm:$0xff]
    %v1458 = vld [vmem:[#allocation14 + $0x130] sm:$0xff]
    %v1459 = vld [vmem:[#allocation14 + $0x138] sm:$0xff]
    %v1460 = vld [vmem:[#allocation14 + $0x140] sm:$0xff]
    %v1461 = vld [vmem:[#allocation14 + $0x148] sm:$0xff]
    %v1462 = vld [vmem:[#allocation14 + $0x150] sm:$0xff]
    %v1463 = vld [vmem:[#allocation14 + $0x158] sm:$0xff]
    %v1464 = vld [vmem:[#allocation14 + $0x160] sm:$0xff]
    %v1465 = vld [vmem:[#allocation14 + $0x168] sm:$0xff]
    %v1466 = vld [vmem:[#allocation14 + $0x170] sm:$0xff]
    %v1467 = vld [vmem:[#allocation14 + $0x178] sm:$0xff]
    %v1468 = vld [vmem:[#allocation14 + $0x180] sm:$0xff]
    %v1469 = vld [vmem:[#allocation14 + $0x188] sm:$0xff]
    %v1470 = vld [vmem:[#allocation14 + $0x190] sm:$0xff]
    %v1471 = vld [vmem:[#allocation14 + $0x198] sm:$0xff]
    %v1472 = vld [vmem:[#allocation14 + $0x1a0] sm:$0xff]
    %v1473 = vld [vmem:[#allocation14 + $0x1a8] sm:$0xff]
    %v1474 = vld [vmem:[#allocation14 + $0x1b0] sm:$0xff]
    %v1475 = vld [vmem:[#allocation14 + $0x1b8] sm:$0xff]
    %v1476 = vld [vmem:[#allocation14 + $0x1c0] sm:$0xff]
    %v1477 = vld [vmem:[#allocation14 + $0x1c8] sm:$0xff]
    %v1478 = vld [vmem:[#allocation14 + $0x1d0] sm:$0xff]
    %v1479 = vld [vmem:[#allocation14 + $0x1d8] sm:$0xff]
    %v1480 = vld [vmem:[#allocation14 + $0x1e0] sm:$0xff]
    %v1481 = vld [vmem:[#allocation14 + $0x1e8] sm:$0xff]
    %v1482 = vld [vmem:[#allocation14 + $0x1f0] sm:$0xff]
    %v1483 = vld [vmem:[#allocation14 + $0x1f8] sm:$0xff]
    %v1484 = vld [vmem:[#allocation14 + $0x200] sm:$0xff]
    %v1485 = vld [vmem:[#allocation14 + $0x208] sm:$0xff]
    %v1486 = vld [vmem:[#allocation14 + $0x210] sm:$0xff]
    %v1487 = vld [vmem:[#allocation14 + $0x218] sm:$0xff]
    %v1488 = vld [vmem:[#allocation14 + $0x220] sm:$0xff]
    %v1489 = vld [vmem:[#allocation14 + $0x228] sm:$0xff]
    %v1490 = vld [vmem:[#allocation14 + $0x230] sm:$0xff]
    %v1491 = vld [vmem:[#allocation14 + $0x238] sm:$0xff]
    %v1492 = vld [vmem:[#allocation14 + $0x240] sm:$0xff]
    %v1493 = vld [vmem:[#allocation14 + $0x248] sm:$0xff]
    %v1494 = vld [vmem:[#allocation14 + $0x250] sm:$0xff]
    %v1495 = vld [vmem:[#allocation14 + $0x258] sm:$0xff]
    %v1496 = vld [vmem:[#allocation14 + $0x260] sm:$0xff]
    %v1497 = vld [vmem:[#allocation14 + $0x268] sm:$0xff]
    %v1498 = vld [vmem:[#allocation14 + $0x270] sm:$0xff]
    %v1499 = vld [vmem:[#allocation14 + $0x278] sm:$0xff]
    %v1500 = vld [vmem:[#allocation14 + $0x280] sm:$0xff]
    %v1501 = vld [vmem:[#allocation14 + $0x288] sm:$0xff]
    %v1502 = vld [vmem:[#allocation14 + $0x290] sm:$0xff]
    %v1503 = vld [vmem:[#allocation14 + $0x298] sm:$0xff]
    %v1504 = vld [vmem:[#allocation14 + $0x2a0] sm:$0xff]
    %v1505 = vld [vmem:[#allocation14 + $0x2a8] sm:$0xff]
    %v1506 = vld [vmem:[#allocation14 + $0x2b0] sm:$0xff]
    %v1507 = vld [vmem:[#allocation14 + $0x2b8] sm:$0xff]
    %v1508 = vld [vmem:[#allocation14 + $0x2c0] sm:$0xff]
    %v1509 = vld [vmem:[#allocation14 + $0x2c8] sm:$0xff]
    %v1510 = vld [vmem:[#allocation14 + $0x2d0] sm:$0xff]
    %v1511 = vld [vmem:[#allocation14 + $0x2d8] sm:$0xff]
    %v1512 = vld [vmem:[#allocation14 + $0x2e0] sm:$0xff]
    %v1513 = vld [vmem:[#allocation14 + $0x2e8] sm:$0xff]
    %v1514 = vld [vmem:[#allocation14 + $0x2f0] sm:$0xff]
    %v1515 = vld [vmem:[#allocation14 + $0x2f8] sm:$0xff]
    %v1516 = vld [vmem:[#allocation14 + $0x300] sm:$0xff]
    %v1517 = vld [vmem:[#allocation14 + $0x308] sm:$0xff]
    %v1518 = vld [vmem:[#allocation14 + $0x310] sm:$0xff]
    %v1519 = vld [vmem:[#allocation14 + $0x318] sm:$0xff]
    %v1520 = vld [vmem:[#allocation14 + $0x320] sm:$0xff]
    %v1521 = vld [vmem:[#allocation14 + $0x328] sm:$0xff]
    %v1522 = vld [vmem:[#allocation14 + $0x330] sm:$0xff]
    %v1523 = vld [vmem:[#allocation14 + $0x338] sm:$0xff]
    %v1524 = vld [vmem:[#allocation14 + $0x340] sm:$0xff]
    %v1525 = vld [vmem:[#allocation14 + $0x348] sm:$0xff]
    %v1526 = vld [vmem:[#allocation14 + $0x350] sm:$0xff]
    %v1527 = vld [vmem:[#allocation14 + $0x358] sm:$0xff]
    %v1528 = vld [vmem:[#allocation14 + $0x360] sm:$0xff]
    %v1529 = vld [vmem:[#allocation14 + $0x368] sm:$0xff]
    %v1530 = vld [vmem:[#allocation14 + $0x370] sm:$0xff]
    %v1531 = vld [vmem:[#allocation14 + $0x378] sm:$0xff]
    %v1532 = vld [vmem:[#allocation14 + $0x380] sm:$0xff]
    %v1533 = vld [vmem:[#allocation14 + $0x388] sm:$0xff]
    %v1534 = vld [vmem:[#allocation14 + $0x390] sm:$0xff]
    %v1535 = vld [vmem:[#allocation14 + $0x398] sm:$0xff]
    %v1536 = vld [vmem:[#allocation14 + $0x3a0] sm:$0xff]
    %v1537 = vld [vmem:[#allocation14 + $0x3a8] sm:$0xff]
    %v1538 = vld [vmem:[#allocation14 + $0x3b0] sm:$0xff]
    %v1539 = vld [vmem:[#allocation14 + $0x3b8] sm:$0xff]
    %v1540 = vld [vmem:[#allocation14 + $0x3c0] sm:$0xff]
    %v1541 = vld [vmem:[#allocation14 + $0x3c8] sm:$0xff]
    %v1542 = vld [vmem:[#allocation14 + $0x3d0] sm:$0xff]
    %v1543 = vld [vmem:[#allocation14 + $0x3d8] sm:$0xff]
    %v1544 = vld [vmem:[#allocation14 + $0x3e0] sm:$0xff]
    %v1545 = vld [vmem:[#allocation14 + $0x3e8] sm:$0xff]
    %v1546 = vld [vmem:[#allocation14 + $0x3f0] sm:$0xff]
    %v1547 = vld [vmem:[#allocation14 + $0x3f8] sm:$0xff]
    %v1548 = vld [vmem:[%s8] sm:$0xf]
    %v1550 = vlaneseq
    %v1551 = vshrl.u32 %v1550, 7
    %v1552 = vsub.s32 0, %v1551
    %v1553 = vrot.slane %v1548, %v1552
    %v1554 = vlaneseq
    %v1555 = vshrl.u32 %v1554, 7
    %v1556 = vsub.s32 1, %v1555
    %v1557 = vrot.slane %v1548, %v1556
    %v1558 = vlaneseq
    %v1559 = vshrl.u32 %v1558, 7
    %v1560 = vsub.s32 2, %v1559
    %v1561 = vrot.slane %v1548, %v1560
    %v1562 = vlaneseq
    %v1563 = vshrl.u32 %v1562, 7
    %v1564 = vsub.s32 3, %v1563
    %v1565 = vrot.slane %v1548, %v1564
    %v1698 = vunpack.c.l.b16 %v1420
    %v1699 = vunpack.c.h.b16 %v1420
    %v1700 = vunpack.c.l.b16 %v1421
    %v1701 = vunpack.c.h.b16 %v1421
    %v1702 = vunpack.c.l.b16 %v1422
    %v1703 = vunpack.c.h.b16 %v1422
    %v1704 = vunpack.c.l.b16 %v1423
    %v1705 = vunpack.c.h.b16 %v1423
    %v1706 = vunpack.c.l.b16 %v1424
    %v1707 = vunpack.c.h.b16 %v1424
    %v1708 = vunpack.c.l.b16 %v1425
    %v1709 = vunpack.c.h.b16 %v1425
    %v1710 = vunpack.c.l.b16 %v1426
    %v1711 = vunpack.c.h.b16 %v1426
    %v1712 = vunpack.c.l.b16 %v1427
    %v1713 = vunpack.c.h.b16 %v1427
    %v1714 = vunpack.c.l.b16 %v1428
    %v1715 = vunpack.c.h.b16 %v1428
    %v1716 = vunpack.c.l.b16 %v1429
    %v1717 = vunpack.c.h.b16 %v1429
    %v1718 = vunpack.c.l.b16 %v1430
    %v1719 = vunpack.c.h.b16 %v1430
    %v1720 = vunpack.c.l.b16 %v1431
    %v1721 = vunpack.c.h.b16 %v1431
    %v1722 = vunpack.c.l.b16 %v1432
    %v1723 = vunpack.c.h.b16 %v1432
    %v1724 = vunpack.c.l.b16 %v1433
    %v1725 = vunpack.c.h.b16 %v1433
    %v1726 = vunpack.c.l.b16 %v1434
    %v1727 = vunpack.c.h.b16 %v1434
    %v1728 = vunpack.c.l.b16 %v1435
    %v1729 = vunpack.c.h.b16 %v1435
    %v1730 = vunpack.c.l.b16 %v1436
    %v1731 = vunpack.c.h.b16 %v1436
    %v1732 = vunpack.c.l.b16 %v1437
    %v1733 = vunpack.c.h.b16 %v1437
    %v1734 = vunpack.c.l.b16 %v1438
    %v1735 = vunpack.c.h.b16 %v1438
    %v1736 = vunpack.c.l.b16 %v1439
    %v1737 = vunpack.c.h.b16 %v1439
    %v1738 = vunpack.c.l.b16 %v1440
    %v1739 = vunpack.c.h.b16 %v1440
    %v1740 = vunpack.c.l.b16 %v1441
    %v1741 = vunpack.c.h.b16 %v1441
    %v1742 = vunpack.c.l.b16 %v1442
    %v1743 = vunpack.c.h.b16 %v1442
    %v1744 = vunpack.c.l.b16 %v1443
    %v1745 = vunpack.c.h.b16 %v1443
    %v1746 = vunpack.c.l.b16 %v1444
    %v1747 = vunpack.c.h.b16 %v1444
    %v1748 = vunpack.c.l.b16 %v1445
    %v1749 = vunpack.c.h.b16 %v1445
    %v1750 = vunpack.c.l.b16 %v1446
    %v1751 = vunpack.c.h.b16 %v1446
    %v1752 = vunpack.c.l.b16 %v1447
    %v1753 = vunpack.c.h.b16 %v1447
    %v1754 = vunpack.c.l.b16 %v1448
    %v1755 = vunpack.c.h.b16 %v1448
    %v1756 = vunpack.c.l.b16 %v1449
    %v1757 = vunpack.c.h.b16 %v1449
    %v1758 = vunpack.c.l.b16 %v1450
    %v1759 = vunpack.c.h.b16 %v1450
    %v1760 = vunpack.c.l.b16 %v1451
    %v1761 = vunpack.c.h.b16 %v1451
    %v1762 = vunpack.c.l.b16 %v1452
    %v1763 = vunpack.c.h.b16 %v1452
    %v1764 = vunpack.c.l.b16 %v1453
    %v1765 = vunpack.c.h.b16 %v1453
    %v1766 = vunpack.c.l.b16 %v1454
    %v1767 = vunpack.c.h.b16 %v1454
    %v1768 = vunpack.c.l.b16 %v1455
    %v1769 = vunpack.c.h.b16 %v1455
    %v1770 = vunpack.c.l.b16 %v1456
    %v1771 = vunpack.c.h.b16 %v1456
    %v1772 = vunpack.c.l.b16 %v1457
    %v1773 = vunpack.c.h.b16 %v1457
    %v1774 = vunpack.c.l.b16 %v1458
    %v1775 = vunpack.c.h.b16 %v1458
    %v1776 = vunpack.c.l.b16 %v1459
    %v1777 = vunpack.c.h.b16 %v1459
    %v1778 = vunpack.c.l.b16 %v1460
    %v1779 = vunpack.c.h.b16 %v1460
    %v1780 = vunpack.c.l.b16 %v1461
    %v1781 = vunpack.c.h.b16 %v1461
    %v1782 = vunpack.c.l.b16 %v1462
    %v1783 = vunpack.c.h.b16 %v1462
    %v1784 = vunpack.c.l.b16 %v1463
    %v1785 = vunpack.c.h.b16 %v1463
    %v1786 = vunpack.c.l.b16 %v1464
    %v1787 = vunpack.c.h.b16 %v1464
    %v1788 = vunpack.c.l.b16 %v1465
    %v1789 = vunpack.c.h.b16 %v1465
    %v1790 = vunpack.c.l.b16 %v1466
    %v1791 = vunpack.c.h.b16 %v1466
    %v1792 = vunpack.c.l.b16 %v1467
    %v1793 = vunpack.c.h.b16 %v1467
    %v1794 = vunpack.c.l.b16 %v1468
    %v1795 = vunpack.c.h.b16 %v1468
    %v1796 = vunpack.c.l.b16 %v1469
    %v1797 = vunpack.c.h.b16 %v1469
    %v1798 = vunpack.c.l.b16 %v1470
    %v1799 = vunpack.c.h.b16 %v1470
    %v1800 = vunpack.c.l.b16 %v1471
    %v1801 = vunpack.c.h.b16 %v1471
    %v1802 = vunpack.c.l.b16 %v1472
    %v1803 = vunpack.c.h.b16 %v1472
    %v1804 = vunpack.c.l.b16 %v1473
    %v1805 = vunpack.c.h.b16 %v1473
    %v1806 = vunpack.c.l.b16 %v1474
    %v1807 = vunpack.c.h.b16 %v1474
    %v1808 = vunpack.c.l.b16 %v1475
    %v1809 = vunpack.c.h.b16 %v1475
    %v1810 = vunpack.c.l.b16 %v1476
    %v1811 = vunpack.c.h.b16 %v1476
    %v1812 = vunpack.c.l.b16 %v1477
    %v1813 = vunpack.c.h.b16 %v1477
    %v1814 = vunpack.c.l.b16 %v1478
    %v1815 = vunpack.c.h.b16 %v1478
    %v1816 = vunpack.c.l.b16 %v1479
    %v1817 = vunpack.c.h.b16 %v1479
    %v1818 = vunpack.c.l.b16 %v1480
    %v1819 = vunpack.c.h.b16 %v1480
    %v1820 = vunpack.c.l.b16 %v1481
    %v1821 = vunpack.c.h.b16 %v1481
    %v1822 = vunpack.c.l.b16 %v1482
    %v1823 = vunpack.c.h.b16 %v1482
    %v1824 = vunpack.c.l.b16 %v1483
    %v1825 = vunpack.c.h.b16 %v1483
    %v1826 = vunpack.c.l.b16 %v1484
    %v1827 = vunpack.c.h.b16 %v1484
    %v1828 = vunpack.c.l.b16 %v1485
    %v1829 = vunpack.c.h.b16 %v1485
    %v1830 = vunpack.c.l.b16 %v1486
    %v1831 = vunpack.c.h.b16 %v1486
    %v1832 = vunpack.c.l.b16 %v1487
    %v1833 = vunpack.c.h.b16 %v1487
    %v1834 = vunpack.c.l.b16 %v1488
    %v1835 = vunpack.c.h.b16 %v1488
    %v1836 = vunpack.c.l.b16 %v1489
    %v1837 = vunpack.c.h.b16 %v1489
    %v1838 = vunpack.c.l.b16 %v1490
    %v1839 = vunpack.c.h.b16 %v1490
    %v1840 = vunpack.c.l.b16 %v1491
    %v1841 = vunpack.c.h.b16 %v1491
    %v1842 = vunpack.c.l.b16 %v1492
    %v1843 = vunpack.c.h.b16 %v1492
    %v1844 = vunpack.c.l.b16 %v1493
    %v1845 = vunpack.c.h.b16 %v1493
    %v1846 = vunpack.c.l.b16 %v1494
    %v1847 = vunpack.c.h.b16 %v1494
    %v1848 = vunpack.c.l.b16 %v1495
    %v1849 = vunpack.c.h.b16 %v1495
    %v1850 = vunpack.c.l.b16 %v1496
    %v1851 = vunpack.c.h.b16 %v1496
    %v1852 = vunpack.c.l.b16 %v1497
    %v1853 = vunpack.c.h.b16 %v1497
    %v1854 = vunpack.c.l.b16 %v1498
    %v1855 = vunpack.c.h.b16 %v1498
    %v1856 = vunpack.c.l.b16 %v1499
    %v1857 = vunpack.c.h.b16 %v1499
    %v1858 = vunpack.c.l.b16 %v1500
    %v1859 = vunpack.c.h.b16 %v1500
    %v1860 = vunpack.c.l.b16 %v1501
    %v1861 = vunpack.c.h.b16 %v1501
    %v1862 = vunpack.c.l.b16 %v1502
    %v1863 = vunpack.c.h.b16 %v1502
    %v1864 = vunpack.c.l.b16 %v1503
    %v1865 = vunpack.c.h.b16 %v1503
    %v1866 = vunpack.c.l.b16 %v1504
    %v1867 = vunpack.c.h.b16 %v1504
    %v1868 = vunpack.c.l.b16 %v1505
    %v1869 = vunpack.c.h.b16 %v1505
    %v1870 = vunpack.c.l.b16 %v1506
    %v1871 = vunpack.c.h.b16 %v1506
    %v1872 = vunpack.c.l.b16 %v1507
    %v1873 = vunpack.c.h.b16 %v1507
    %v1874 = vunpack.c.l.b16 %v1508
    %v1875 = vunpack.c.h.b16 %v1508
    %v1876 = vunpack.c.l.b16 %v1509
    %v1877 = vunpack.c.h.b16 %v1509
    %v1878 = vunpack.c.l.b16 %v1510
    %v1879 = vunpack.c.h.b16 %v1510
    %v1880 = vunpack.c.l.b16 %v1511
    %v1881 = vunpack.c.h.b16 %v1511
    %v1882 = vunpack.c.l.b16 %v1512
    %v1883 = vunpack.c.h.b16 %v1512
    %v1884 = vunpack.c.l.b16 %v1513
    %v1885 = vunpack.c.h.b16 %v1513
    %v1886 = vunpack.c.l.b16 %v1514
    %v1887 = vunpack.c.h.b16 %v1514
    %v1888 = vunpack.c.l.b16 %v1515
    %v1889 = vunpack.c.h.b16 %v1515
    %v1890 = vunpack.c.l.b16 %v1516
    %v1891 = vunpack.c.h.b16 %v1516
    %v1892 = vunpack.c.l.b16 %v1517
    %v1893 = vunpack.c.h.b16 %v1517
    %v1894 = vunpack.c.l.b16 %v1518
    %v1895 = vunpack.c.h.b16 %v1518
    %v1896 = vunpack.c.l.b16 %v1519
    %v1897 = vunpack.c.h.b16 %v1519
    %v1898 = vunpack.c.l.b16 %v1520
    %v1899 = vunpack.c.h.b16 %v1520
    %v1900 = vunpack.c.l.b16 %v1521
    %v1901 = vunpack.c.h.b16 %v1521
    %v1902 = vunpack.c.l.b16 %v1522
    %v1903 = vunpack.c.h.b16 %v1522
    %v1904 = vunpack.c.l.b16 %v1523
    %v1905 = vunpack.c.h.b16 %v1523
    %v1906 = vunpack.c.l.b16 %v1524
    %v1907 = vunpack.c.h.b16 %v1524
    %v1908 = vunpack.c.l.b16 %v1525
    %v1909 = vunpack.c.h.b16 %v1525
    %v1910 = vunpack.c.l.b16 %v1526
    %v1911 = vunpack.c.h.b16 %v1526
    %v1912 = vunpack.c.l.b16 %v1527
    %v1913 = vunpack.c.h.b16 %v1527
    %v1914 = vunpack.c.l.b16 %v1528
    %v1915 = vunpack.c.h.b16 %v1528
    %v1916 = vunpack.c.l.b16 %v1529
    %v1917 = vunpack.c.h.b16 %v1529
    %v1918 = vunpack.c.l.b16 %v1530
    %v1919 = vunpack.c.h.b16 %v1530
    %v1920 = vunpack.c.l.b16 %v1531
    %v1921 = vunpack.c.h.b16 %v1531
    %v1922 = vunpack.c.l.b16 %v1532
    %v1923 = vunpack.c.h.b16 %v1532
    %v1924 = vunpack.c.l.b16 %v1533
    %v1925 = vunpack.c.h.b16 %v1533
    %v1926 = vunpack.c.l.b16 %v1534
    %v1927 = vunpack.c.h.b16 %v1534
    %v1928 = vunpack.c.l.b16 %v1535
    %v1929 = vunpack.c.h.b16 %v1535
    %v1930 = vunpack.c.l.b16 %v1536
    %v1931 = vunpack.c.h.b16 %v1536
    %v1932 = vunpack.c.l.b16 %v1537
    %v1933 = vunpack.c.h.b16 %v1537
    %v1934 = vunpack.c.l.b16 %v1538
    %v1935 = vunpack.c.h.b16 %v1538
    %v1936 = vunpack.c.l.b16 %v1539
    %v1937 = vunpack.c.h.b16 %v1539
    %v1938 = vunpack.c.l.b16 %v1540
    %v1939 = vunpack.c.h.b16 %v1540
    %v1940 = vunpack.c.l.b16 %v1541
    %v1941 = vunpack.c.h.b16 %v1541
    %v1942 = vunpack.c.l.b16 %v1542
    %v1943 = vunpack.c.h.b16 %v1542
    %v1944 = vunpack.c.l.b16 %v1543
    %v1945 = vunpack.c.h.b16 %v1543
    %v1946 = vunpack.c.l.b16 %v1544
    %v1947 = vunpack.c.h.b16 %v1544
    %v1948 = vunpack.c.l.b16 %v1545
    %v1949 = vunpack.c.h.b16 %v1545
    %v1950 = vunpack.c.l.b16 %v1546
    %v1951 = vunpack.c.h.b16 %v1546
    %v1952 = vunpack.c.l.b16 %v1547
    %v1953 = vunpack.c.h.b16 %v1547
    %v1954 = vpack.c.b16 %v1702, %v1698
    %v1955 = vpack.c.b16 %v1703, %v1699
    %v1956 = vpack.c.b16 %v1704, %v1700
    %v1957 = vpack.c.b16 %v1705, %v1701
    %v1958 = vpack.c.b16 %v1710, %v1706
    %v1959 = vpack.c.b16 %v1711, %v1707
    %v1960 = vpack.c.b16 %v1712, %v1708
    %v1961 = vpack.c.b16 %v1713, %v1709
    %v1962 = vpack.c.b16 %v1718, %v1714
    %v1963 = vpack.c.b16 %v1719, %v1715
    %v1964 = vpack.c.b16 %v1720, %v1716
    %v1965 = vpack.c.b16 %v1721, %v1717
    %v1966 = vpack.c.b16 %v1726, %v1722
    %v1967 = vpack.c.b16 %v1727, %v1723
    %v1968 = vpack.c.b16 %v1728, %v1724
    %v1969 = vpack.c.b16 %v1729, %v1725
    %v1970 = vpack.c.b16 %v1734, %v1730
    %v1971 = vpack.c.b16 %v1735, %v1731
    %v1972 = vpack.c.b16 %v1736, %v1732
    %v1973 = vpack.c.b16 %v1737, %v1733
    %v1974 = vpack.c.b16 %v1742, %v1738
    %v1975 = vpack.c.b16 %v1743, %v1739
    %v1976 = vpack.c.b16 %v1744, %v1740
    %v1977 = vpack.c.b16 %v1745, %v1741
    %v1978 = vpack.c.b16 %v1750, %v1746
    %v1979 = vpack.c.b16 %v1751, %v1747
    %v1980 = vpack.c.b16 %v1752, %v1748
    %v1981 = vpack.c.b16 %v1753, %v1749
    %v1982 = vpack.c.b16 %v1758, %v1754
    %v1983 = vpack.c.b16 %v1759, %v1755
    %v1984 = vpack.c.b16 %v1760, %v1756
    %v1985 = vpack.c.b16 %v1761, %v1757
    %v1986 = vpack.c.b16 %v1766, %v1762
    %v1987 = vpack.c.b16 %v1767, %v1763
    %v1988 = vpack.c.b16 %v1768, %v1764
    %v1989 = vpack.c.b16 %v1769, %v1765
    %v1990 = vpack.c.b16 %v1774, %v1770
    %v1991 = vpack.c.b16 %v1775, %v1771
    %v1992 = vpack.c.b16 %v1776, %v1772
    %v1993 = vpack.c.b16 %v1777, %v1773
    %v1994 = vpack.c.b16 %v1782, %v1778
    %v1995 = vpack.c.b16 %v1783, %v1779
    %v1996 = vpack.c.b16 %v1784, %v1780
    %v1997 = vpack.c.b16 %v1785, %v1781
    %v1998 = vpack.c.b16 %v1790, %v1786
    %v1999 = vpack.c.b16 %v1791, %v1787
    %v2000 = vpack.c.b16 %v1792, %v1788
    %v2001 = vpack.c.b16 %v1793, %v1789
    %v2002 = vpack.c.b16 %v1798, %v1794
    %v2003 = vpack.c.b16 %v1799, %v1795
    %v2004 = vpack.c.b16 %v1800, %v1796
    %v2005 = vpack.c.b16 %v1801, %v1797
    %v2006 = vpack.c.b16 %v1806, %v1802
    %v2007 = vpack.c.b16 %v1807, %v1803
    %v2008 = vpack.c.b16 %v1808, %v1804
    %v2009 = vpack.c.b16 %v1809, %v1805
    %v2010 = vpack.c.b16 %v1814, %v1810
    %v2011 = vpack.c.b16 %v1815, %v1811
    %v2012 = vpack.c.b16 %v1816, %v1812
    %v2013 = vpack.c.b16 %v1817, %v1813
    %v2014 = vpack.c.b16 %v1822, %v1818
    %v2015 = vpack.c.b16 %v1823, %v1819
    %v2016 = vpack.c.b16 %v1824, %v1820
    %v2017 = vpack.c.b16 %v1825, %v1821
    %v2018 = vpack.c.b16 %v1830, %v1826
    %v2019 = vpack.c.b16 %v1831, %v1827
    %v2020 = vpack.c.b16 %v1832, %v1828
    %v2021 = vpack.c.b16 %v1833, %v1829
    %v2022 = vpack.c.b16 %v1838, %v1834
    %v2023 = vpack.c.b16 %v1839, %v1835
    %v2024 = vpack.c.b16 %v1840, %v1836
    %v2025 = vpack.c.b16 %v1841, %v1837
    %v2026 = vpack.c.b16 %v1846, %v1842
    %v2027 = vpack.c.b16 %v1847, %v1843
    %v2028 = vpack.c.b16 %v1848, %v1844
    %v2029 = vpack.c.b16 %v1849, %v1845
    %v2030 = vpack.c.b16 %v1854, %v1850
    %v2031 = vpack.c.b16 %v1855, %v1851
    %v2032 = vpack.c.b16 %v1856, %v1852
    %v2033 = vpack.c.b16 %v1857, %v1853
    %v2034 = vpack.c.b16 %v1862, %v1858
    %v2035 = vpack.c.b16 %v1863, %v1859
    %v2036 = vpack.c.b16 %v1864, %v1860
    %v2037 = vpack.c.b16 %v1865, %v1861
    %v2038 = vpack.c.b16 %v1870, %v1866
    %v2039 = vpack.c.b16 %v1871, %v1867
    %v2040 = vpack.c.b16 %v1872, %v1868
    %v2041 = vpack.c.b16 %v1873, %v1869
    %v2042 = vpack.c.b16 %v1878, %v1874
    %v2043 = vpack.c.b16 %v1879, %v1875
    %v2044 = vpack.c.b16 %v1880, %v1876
    %v2045 = vpack.c.b16 %v1881, %v1877
    %v2046 = vpack.c.b16 %v1886, %v1882
    %v2047 = vpack.c.b16 %v1887, %v1883
    %v2048 = vpack.c.b16 %v1888, %v1884
    %v2049 = vpack.c.b16 %v1889, %v1885
    %v2050 = vpack.c.b16 %v1894, %v1890
    %v2051 = vpack.c.b16 %v1895, %v1891
    %v2052 = vpack.c.b16 %v1896, %v1892
    %v2053 = vpack.c.b16 %v1897, %v1893
    %v2054 = vpack.c.b16 %v1902, %v1898
    %v2055 = vpack.c.b16 %v1903, %v1899
    %v2056 = vpack.c.b16 %v1904, %v1900
    %v2057 = vpack.c.b16 %v1905, %v1901
    %v2058 = vpack.c.b16 %v1910, %v1906
    %v2059 = vpack.c.b16 %v1911, %v1907
    %v2060 = vpack.c.b16 %v1912, %v1908
    %v2061 = vpack.c.b16 %v1913, %v1909
    %v2062 = vpack.c.b16 %v1918, %v1914
    %v2063 = vpack.c.b16 %v1919, %v1915
    %v2064 = vpack.c.b16 %v1920, %v1916
    %v2065 = vpack.c.b16 %v1921, %v1917
    %v2066 = vpack.c.b16 %v1926, %v1922
    %v2067 = vpack.c.b16 %v1927, %v1923
    %v2068 = vpack.c.b16 %v1928, %v1924
    %v2069 = vpack.c.b16 %v1929, %v1925
    %v2070 = vpack.c.b16 %v1934, %v1930
    %v2071 = vpack.c.b16 %v1935, %v1931
    %v2072 = vpack.c.b16 %v1936, %v1932
    %v2073 = vpack.c.b16 %v1937, %v1933
    %v2074 = vpack.c.b16 %v1942, %v1938
    %v2075 = vpack.c.b16 %v1943, %v1939
    %v2076 = vpack.c.b16 %v1944, %v1940
    %v2077 = vpack.c.b16 %v1945, %v1941
    %v2078 = vpack.c.b16 %v1950, %v1946
    %v2079 = vpack.c.b16 %v1951, %v1947
    %v2080 = vpack.c.b16 %v1952, %v1948
    %v2081 = vpack.c.b16 %v1953, %v1949
    %2210 = vmatprep.subr.bf16.mxu0 %v1955
    %2211 = vmatpush1.bf16.msra.mxu0 %v1954
    %2212 = vmatprep.subr.bf16.mxu0 %v1959
    %2213 = vmatpush1.bf16.msra.mxu0 %v1958
    %2214 = vmatprep.subr.bf16.mxu0 %v1963
    %2215 = vmatpush1.bf16.msra.mxu0 %v1962
    %2216 = vmatprep.subr.bf16.mxu0 %v1967
    %2217 = vmatpush1.bf16.msra.mxu0 %v1966
    %2218 = vmatprep.subr.bf16.mxu0 %v1971
    %2219 = vmatpush1.bf16.msra.mxu0 %v1970
    %2220 = vmatprep.subr.bf16.mxu0 %v1975
    %2221 = vmatpush1.bf16.msra.mxu0 %v1974
    %2222 = vmatprep.subr.bf16.mxu0 %v1979
    %2223 = vmatpush1.bf16.msra.mxu0 %v1978
    %2224 = vmatprep.subr.bf16.mxu0 %v1983
    %2225 = vmatpush1.bf16.msra.mxu0 %v1982
    %2226 = vmatprep.subr.bf16.mxu0 %v1987
    %2227 = vmatpush1.bf16.msra.mxu0 %v1986
    %2228 = vmatprep.subr.bf16.mxu0 %v1991
    %2229 = vmatpush1.bf16.msra.mxu0 %v1990
    %2230 = vmatprep.subr.bf16.mxu0 %v1995
    %2231 = vmatpush1.bf16.msra.mxu0 %v1994
    %2232 = vmatprep.subr.bf16.mxu0 %v1999
    %2233 = vmatpush1.bf16.msra.mxu0 %v1998
    %2234 = vmatprep.subr.bf16.mxu0 %v2003
    %2235 = vmatpush1.bf16.msra.mxu0 %v2002
    %2236 = vmatprep.subr.bf16.mxu0 %v2007
    %2237 = vmatpush1.bf16.msra.mxu0 %v2006
    %2238 = vmatprep.subr.bf16.mxu0 %v2011
    %2239 = vmatpush1.bf16.msra.mxu0 %v2010
    %2240 = vmatprep.subr.bf16.mxu0 %v2015
    %2241 = vmatpush1.bf16.msra.mxu0 %v2014
    %2242 = vmatprep.mubr.bf16.mxu0 %v1417
    %2243 = vmatmul.mubr.bf16.gmra.mrb[0].mxu0 %v1416
    %v2244 = vpop.f32.mrb[0].mxu0
    %v2245 = vadd.f32 %v1553, %v2244
    %v2246 = vpop.f32.mrb[0].mxu0
    %v2247 = vadd.f32 %v1557, %v2246
    %v2248 = vpop.f32.mrb[0].mxu0
    %v2249 = vpop.f32.mrb[0].mxu0
    %2250 = vdwg.mxu0
    %2251 = vmatprep.subr.bf16.mxu0 %v2019
    %2252 = vmatpush1.bf16.msra.mxu0 %v2018
    %2253 = vmatprep.subr.bf16.mxu0 %v2023
    %2254 = vmatpush1.bf16.msra.mxu0 %v2022
    %2255 = vmatprep.subr.bf16.mxu0 %v2027
    %2256 = vmatpush1.bf16.msra.mxu0 %v2026
    %2257 = vmatprep.subr.bf16.mxu0 %v2031
    %2258 = vmatpush1.bf16.msra.mxu0 %v2030
    %2259 = vmatprep.subr.bf16.mxu0 %v2035
    %2260 = vmatpush1.bf16.msra.mxu0 %v2034
    %2261 = vmatprep.subr.bf16.mxu0 %v2039
    %2262 = vmatpush1.bf16.msra.mxu0 %v2038
    %2263 = vmatprep.subr.bf16.mxu0 %v2043
    %2264 = vmatpush1.bf16.msra.mxu0 %v2042
    %2265 = vmatprep.subr.bf16.mxu0 %v2047
    %2266 = vmatpush1.bf16.msra.mxu0 %v2046
    %2267 = vmatprep.subr.bf16.mxu0 %v2051
    %2268 = vmatpush1.bf16.msra.mxu0 %v2050
    %2269 = vmatprep.subr.bf16.mxu0 %v2055
    %2270 = vmatpush1.bf16.msra.mxu0 %v2054
    %2271 = vmatprep.subr.bf16.mxu0 %v2059
    %2272 = vmatpush1.bf16.msra.mxu0 %v2058
    %2273 = vmatprep.subr.bf16.mxu0 %v2063
    %2274 = vmatpush1.bf16.msra.mxu0 %v2062
    %2275 = vmatprep.subr.bf16.mxu0 %v2067
    %2276 = vmatpush1.bf16.msra.mxu0 %v2066
    %2277 = vmatprep.subr.bf16.mxu0 %v2071
    %2278 = vmatpush1.bf16.msra.mxu0 %v2070
    %2279 = vmatprep.subr.bf16.mxu0 %v2075
    %2280 = vmatpush1.bf16.msra.mxu0 %v2074
    %2281 = vmatprep.subr.bf16.mxu0 %v2079
    %2282 = vmatpush1.bf16.msra.mxu0 %v2078
    %2283 = vmatprep.mubr.bf16.mxu0 %v1419
    %2284 = vmatmul.mubr.bf16.gmra.mrb[0].mxu0 %v1418
    %v2285 = vpop.f32.mrb[0].mxu0
    %v2286 = vadd.f32 %v2245, %v2285
    %v2287 = vpop.f32.mrb[0].mxu0
    %v2288 = vadd.f32 %v2247, %v2287
    %v2289 = vpop.f32.mrb[0].mxu0
    %v2290 = vpop.f32.mrb[0].mxu0
    %2291 = vdwg.mxu0
    %2292 = vmatprep.subr.bf16.mxu0 %v1957
    %2293 = vmatpush1.bf16.msra.mxu0 %v1956
    %2294 = vmatprep.subr.bf16.mxu0 %v1961
    %2295 = vmatpush1.bf16.msra.mxu0 %v1960
    %2296 = vmatprep.subr.bf16.mxu0 %v1965
    %2297 = vmatpush1.bf16.msra.mxu0 %v1964
    %2298 = vmatprep.subr.bf16.mxu0 %v1969
    %2299 = vmatpush1.bf16.msra.mxu0 %v1968
    %2300 = vmatprep.subr.bf16.mxu0 %v1973
    %2301 = vmatpush1.bf16.msra.mxu0 %v1972
    %2302 = vmatprep.subr.bf16.mxu0 %v1977
    %2303 = vmatpush1.bf16.msra.mxu0 %v1976
    %2304 = vmatprep.subr.bf16.mxu0 %v1981
    %2305 = vmatpush1.bf16.msra.mxu0 %v1980
    %2306 = vmatprep.subr.bf16.mxu0 %v1985
    %2307 = vmatpush1.bf16.msra.mxu0 %v1984
    %2308 = vmatprep.subr.bf16.mxu0 %v1989
    %2309 = vmatpush1.bf16.msra.mxu0 %v1988
    %2310 = vmatprep.subr.bf16.mxu0 %v1993
    %2311 = vmatpush1.bf16.msra.mxu0 %v1992
    %2312 = vmatprep.subr.bf16.mxu0 %v1997
    %2313 = vmatpush1.bf16.msra.mxu0 %v1996
    %2314 = vmatprep.subr.bf16.mxu0 %v2001
    %2315 = vmatpush1.bf16.msra.mxu0 %v2000
    %2316 = vmatprep.subr.bf16.mxu0 %v2005
    %2317 = vmatpush1.bf16.msra.mxu0 %v2004
    %2318 = vmatprep.subr.bf16.mxu0 %v2009
    %2319 = vmatpush1.bf16.msra.mxu0 %v2008
    %2320 = vmatprep.subr.bf16.mxu0 %v2013
    %2321 = vmatpush1.bf16.msra.mxu0 %v2012
    %2322 = vmatprep.subr.bf16.mxu0 %v2017
    %2323 = vmatpush1.bf16.msra.mxu0 %v2016
    %2324 = vmatprep.mubr.bf16.mxu0 %v1417
    %2325 = vmatmul.mubr.bf16.gmra.mrb[0].mxu0 %v1416
    %v2326 = vpop.f32.mrb[0].mxu0
    %v2327 = vadd.f32 %v1561, %v2326
    %v2328 = vpop.f32.mrb[0].mxu0
    %v2329 = vadd.f32 %v1565, %v2328
    %v2330 = vpop.f32.mrb[0].mxu0
    %v2331 = vpop.f32.mrb[0].mxu0
    %2332 = vdwg.mxu0
    %2333 = vmatprep.subr.bf16.mxu0 %v2021
    %2334 = vmatpush1.bf16.msra.mxu0 %v2020
    %2335 = vmatprep.subr.bf16.mxu0 %v2025
    %2336 = vmatpush1.bf16.msra.mxu0 %v2024
    %2337 = vmatprep.subr.bf16.mxu0 %v2029
    %2338 = vmatpush1.bf16.msra.mxu0 %v2028
    %2339 = vmatprep.subr.bf16.mxu0 %v2033
    %2340 = vmatpush1.bf16.msra.mxu0 %v2032
    %2341 = vmatprep.subr.bf16.mxu0 %v2037
    %2342 = vmatpush1.bf16.msra.mxu0 %v2036
    %2343 = vmatprep.subr.bf16.mxu0 %v2041
    %2344 = vmatpush1.bf16.msra.mxu0 %v2040
    %2345 = vmatprep.subr.bf16.mxu0 %v2045
    %2346 = vmatpush1.bf16.msra.mxu0 %v2044
    %2347 = vmatprep.subr.bf16.mxu0 %v2049
    %2348 = vmatpush1.bf16.msra.mxu0 %v2048
    %2349 = vmatprep.subr.bf16.mxu0 %v2053
    %2350 = vmatpush1.bf16.msra.mxu0 %v2052
    %2351 = vmatprep.subr.bf16.mxu0 %v2057
    %2352 = vmatpush1.bf16.msra.mxu0 %v2056
    %2353 = vmatprep.subr.bf16.mxu0 %v2061
    %2354 = vmatpush1.bf16.msra.mxu0 %v2060
    %2355 = vmatprep.subr.bf16.mxu0 %v2065
    %2356 = vmatpush1.bf16.msra.mxu0 %v2064
    %2357 = vmatprep.subr.bf16.mxu0 %v2069
    %2358 = vmatpush1.bf16.msra.mxu0 %v2068
    %2359 = vmatprep.subr.bf16.mxu0 %v2073
    %2360 = vmatpush1.bf16.msra.mxu0 %v2072
    %2361 = vmatprep.subr.bf16.mxu0 %v2077
    %2362 = vmatpush1.bf16.msra.mxu0 %v2076
    %2363 = vmatprep.subr.bf16.mxu0 %v2081
    %2364 = vmatpush1.bf16.msra.mxu0 %v2080
    %2365 = vmatprep.mubr.bf16.mxu0 %v1419
    %2366 = vmatmul.mubr.bf16.gmra.mrb[0].mxu0 %v1418
    %v2367 = vpop.f32.mrb[0].mxu0
    %v2368 = vadd.f32 %v2327, %v2367
    %v2369 = vpop.f32.mrb[0].mxu0
    %v2370 = vadd.f32 %v2329, %v2369
    %v2371 = vpop.f32.mrb[0].mxu0
    %v2372 = vpop.f32.mrb[0].mxu0
    %2373 = vdwg.mxu0
    %v2374 = vmul.f32 %v2286, 0.2
    %v2375 = vmul.f32 %v2288, 0.2
    %v2376 = vmul.f32 %v2368, 0.2
    %v2377 = vmul.f32 %v2370, 0.2
    %v2378 = vmax.f32 %v2286, %v2374
    %v2379 = vmax.f32 %v2288, %v2375
    %v2380 = vmax.f32 %v2368, %v2376
    %v2381 = vmax.f32 %v2370, %v2377
    %v2382 = vld [vmem:[%s9] sm:$0xf]
    %v2384 = vlaneseq
    %v2385 = vshrl.u32 %v2384, 7
    %v2386 = vsub.s32 0, %v2385
    %v2387 = vrot.slane %v2382, %v2386
    %v2388 = vlaneseq
    %v2389 = vshrl.u32 %v2388, 7
    %v2390 = vsub.s32 1, %v2389
    %v2391 = vrot.slane %v2382, %v2390
    %v2392 = vlaneseq
    %v2393 = vshrl.u32 %v2392, 7
    %v2394 = vsub.s32 2, %v2393
    %v2395 = vrot.slane %v2382, %v2394
    %v2396 = vlaneseq
    %v2397 = vshrl.u32 %v2396, 7
    %v2398 = vsub.s32 3, %v2397
    %v2399 = vrot.slane %v2382, %v2398
    %v2404 = vmul.f32 %v2378, %v2387
    %v2405 = vmul.f32 %v2379, %v2391
    %v2406 = vmul.f32 %v2380, %v2395
    %v2407 = vmul.f32 %v2381, %v2399
    %v2408 = vadd.f32 %v2404, %v2405
    %v2409 = vadd.f32 %v2408, %v2406
    %v2410 = vadd.f32 %v2409, %v2407
    %2411 = vadd.xlane.f32.xlu0 %v2410
    %v2412 = vpop.xlane.xlu0 %2411
    %v2413 = vld [vmem:[#allocation3] sm:$0x1]
    %v2415 = vlaneseq
    %v2416 = vshrl.u32 %v2415, 7
    %v2417 = vsub.s32 0, %v2416
    %v2418 = vrot.slane %v2413, %v2417
    %v2420 = vadd.f32 %v2412, %v2418
    %2422 = vset.pattern.permute.xlu0 0
    %2423 = vperm.xlu0 %2422, %v2420
    %v2424 = vpop.permute.xlu0 %2423
    %2426 = vst [vmem:[#allocation15] sm:$0xff] %v2424
    // Predicated region
    $region70: #{tpu_custom_call.1} parent=1 // pred_check
      _
    $region71: #{tpu_custom_call.1} parent=1 // pred_check_branch
      %2428 = sbr.rel (0) target = $region73
    $region72: #{tpu_custom_call.1} parent=1 // pred_region
      %s2430 = ssub.s32 128, 128
      %2431 = vsyncadd [#allocation6], %s2430
      %s2433 = sshll.u32 [#allocation15], 4
      %s2434 = int_to_ptr.vmem [resolvable:$true] %s2433
      %2436 = dma.vmem_to_hbm [thread:$0]  %s2434, 128, %s11, [#allocation6]
    $region73: #{tpu_custom_call.1} parent=1 // pred_fallthru
      _
    // Predicated region
    $region74: #{tpu_custom_call.1} parent=1 // pred_check
      _
    $region75: #{tpu_custom_call.1} parent=1 // pred_check_branch
      %2438 = sbr.rel (0) target = $region77
    $region76: #{tpu_custom_call.1} parent=1 // pred_region
      %2439 = dma.done [#allocation6], 128
    $region77: #{tpu_custom_call.1} parent=1 // pred_fallthru
      _
    %2440 = vsyncpa [#allocation5], 1
    %2441 = vsyncpa [#allocation10], 1
    %2442 = vsyncpa [#allocation13], 1
    %2443 = vsyncpa [#allocation6], 1
    %2444 = vsyncpa [#allocation7], 1

</llo_original>
